<compile_context>
chip_gen: v6e
topology: v6e:2x2x1
jax: 0.10.0
libtpu: 0.0.40
codegen_flags: <defaults>
</compile_context>

<pallas_src>
import functools

import jax
import jax.numpy as jnp
import numpy as np
from jax import lax
from jax.experimental import pallas as pl
from jax.experimental.pallas import tpu as pltpu


# ----------------------------------------------------------------------------------
# Pallas kernel: one LSTM layer, both directions, chunked over time.
# ----------------------------------------------------------------------------------
def _bilstm_layer_kernel(x_ref, wih_ref, whh_ref, b_ref, h0_ref, c0_ref,
                         out_ref, hn_ref, cn_ref,
                         h_sc, c_sc, gx_sc):
    # x_ref  : (T_chunk * B, D)   time chunk of the layer input, flattened (t, b) rows.
    #                             The chunk for this (direction, step) is selected by
    #                             the index_map (reversed chunk order for direction 1).
    # wih_ref: (D, 4H)            this direction's input weights (pre-transposed)
    # whh_ref: (H, 4H)            this direction's recurrent weights (pre-transposed)
    # b_ref  : (1, 4H)            b_ih + b_hh for this direction
    # h0/c0  : (B, H)             this direction's initial state
    # out_ref: (T_chunk, B, H)    this direction's output chunk (original time order)
    # hn/cn  : (B, H)             this direction's final state
    # h_sc/c_sc : (B, H)          running state, persists across time chunks
    # gx_sc  : (T_chunk*B, 4H)    precomputed input-projection gates for the chunk
    d = pl.program_id(0)            # 0 = forward, 1 = backward
    t_blk = pl.program_id(1)
    n_blk = pl.num_programs(1)
    Tc, B, H = out_ref.shape

    @pl.when(t_blk == 0)
    def _():
        h_sc[...] = h0_ref[...]
        c_sc[...] = c0_ref[...]

    # Hoisted input projection + bias for the whole chunk: one MXU matmul with
    # T_chunk*B rows instead of T_chunk tiny (B, D) matmuls inside the serial loop.
    gx_sc[...] = (jnp.dot(x_ref[...], wih_ref[...],
                          preferred_element_type=jnp.float32)
                  + b_ref[...])

    w_hh = whh_ref[...]             # hoist the recurrent-weight load out of the loop

    def step(i, carry):
        # Forward walks the chunk 0..Tc-1, backward walks Tc-1..0, so no reversed
        # copy of the sequence is ever materialized in HBM.
        t_local = (1 - d) * i + d * (Tc - 1 - i)
        gates = (gx_sc[pl.ds(t_local * B, B), :]
                 + jnp.dot(h_sc[...], w_hh, preferred_element_type=jnp.float32))
        # TODO(synk): gate slices are sub-128-lane for small H; for production sizes
        # pick H as a multiple of 128 so i/f/g/o occupy whole vregs.
        i_g = jax.nn.sigmoid(gates[:, 0 * H:1 * H])
        f_g = jax.nn.sigmoid(gates[:, 1 * H:2 * H])
        g_g = jnp.tanh(gates[:, 2 * H:3 * H])
        o_g = jax.nn.sigmoid(gates[:, 3 * H:4 * H])
        c_new = f_g * c_sc[...] + i_g * g_g
        h_new = o_g * jnp.tanh(c_new)
        c_sc[...] = c_new
        h_sc[...] = h_new
        out_ref[t_local] = h_new
        return carry

    lax.fori_loop(0, Tc, step, 0, unroll=min(Tc, 8))

    @pl.when(t_blk == n_blk - 1)
    def _():
        hn_ref[...] = h_sc[...]
        cn_ref[...] = c_sc[...]


def _choose_t_chunk(T, B, D, H, budget_bytes=12 * 1024 * 1024):
    """Largest time chunk whose double-buffered VMEM footprint fits the budget.

    Budget is conservative so the kernel stays well inside v7x's 64 MiB VMEM
    (32 MiB default scoped limit) while keeping chunks big enough to pipeline.
    """
    def vmem_bytes(tc):
        x_blk = tc * B * D * 4
        out_blk = tc * B * H * 4
        gx = tc * B * 4 * H * 4
        w = (D + H + 1) * 4 * H * 4
        state = 4 * B * H * 4
        return 2 * (x_blk + out_blk + w) + gx + state

    if vmem_bytes(T) <= budget_bytes:
        return T                      # whole sequence in one chunk
    best = None
    for tc in range(T - 1, 0, -1):
        if T % tc:
            continue
        if (tc * B) % 8:              # flattened (t, b) block must be sublane aligned
            continue
        if vmem_bytes(tc) <= budget_bytes:
            best = tc
            break
    if best is None:
        # TODO(synk): pad T to a VMEM-sized chunk multiple for very long ragged
        # sequences; fall back to the whole sequence for now.
        best = T
    return best


def _bilstm_layer(x_2d, w_ih_t, w_hh_t, bias, h0, c0, *, T, t_chunk):
    """One bidirectional LSTM layer in a single pallas_call.

    x_2d   : (T*B, D)  layer input, row index = t*B + b
    w_ih_t : (2, D, 4H)   w_hh_t : (2, H, 4H)   bias : (2, 1, 4H)
    h0, c0 : (2, B, H)
    returns out (2, T, B, H), h_n (2, B, H), c_n (2, B, H)
    """
    _, D = x_2d.shape
    B, H = h0.shape[1], h0.shape[2]
    G = 4 * H
    NT = T // t_chunk

    def time_blk(d, t):
        # forward reads/writes chunk t; backward reads/writes chunk NT-1-t.
        return (1 - d) * t + d * (NT - 1 - t)

    dir_map3 = lambda d, t: (d, 0, 0)

    grid_spec = pltpu.PrefetchScalarGridSpec(
        num_scalar_prefetch=0,
        grid=(2, NT),
        in_specs=[
            pl.BlockSpec((t_chunk * B, D), lambda d, t: (time_blk(d, t), 0)),
            pl.BlockSpec((None, D, G), dir_map3),
            pl.BlockSpec((None, H, G), dir_map3),
            pl.BlockSpec((None, 1, G), dir_map3),
            pl.BlockSpec((None, B, H), dir_map3),
            pl.BlockSpec((None, B, H), dir_map3),
        ],
        out_specs=(
            pl.BlockSpec((None, t_chunk, B, H),
                         lambda d, t: (d, time_blk(d, t), 0, 0)),
            pl.BlockSpec((None, B, H), dir_map3),
            pl.BlockSpec((None, B, H), dir_map3),
        ),
        scratch_shapes=[
            pltpu.VMEM((B, H), jnp.float32),            # h state
            pltpu.VMEM((B, H), jnp.float32),            # c state
            pltpu.VMEM((t_chunk * B, G), jnp.float32),  # precomputed x-gates
        ],
    )
    out_shapes = (
        jax.ShapeDtypeStruct((2, T, B, H), jnp.float32),
        jax.ShapeDtypeStruct((2, B, H), jnp.float32),
        jax.ShapeDtypeStruct((2, B, H), jnp.float32),
    )
    return pl.pallas_call(
        _bilstm_layer_kernel,
        out_shape=out_shapes,
        grid_spec=grid_spec,
        compiler_params=pltpu.CompilerParams(
            dimension_semantics=("parallel", "arbitrary"),
            vmem_limit_bytes=32 * 1024 * 1024,
        ),
    )(x_2d, w_ih_t, w_hh_t, bias, h0, c0)


# ----------------------------------------------------------------------------------
# EncoderLSTM forward (matches nn.LSTM(bidirectional=True, batch_first=True))
# ----------------------------------------------------------------------------------
def encoder_lstm_forward(inputs, hidden, params, num_layers, hidden_size):
    """inputs: (B, W, D); hidden = (h0, c0) each (num_layers*2, B, H).

    Returns (output (B, W, 2H), (h_n, c_n)) exactly like the PyTorch module.
    """
    h0_all, c0_all = hidden
    x = jnp.transpose(inputs, (1, 0, 2)).astype(jnp.float32)     # (T, B, D)
    T, B, _ = x.shape
    H = hidden_size

    h_n, c_n = [], []
    layer_input = x
    for l in range(num_layers):
        D_in = layer_input.shape[-1]
        # Stack both directions on a leading axis: one pallas_call per layer.
        w_ih_t = jnp.stack([params[2 * l + d][0].T for d in range(2)])  # (2, D, 4H)
        w_hh_t = jnp.stack([params[2 * l + d][1].T for d in range(2)])  # (2, H, 4H)
        bias = jnp.stack([(params[2 * l + d][2] + params[2 * l + d][3])[None, :]
                          for d in range(2)])                            # (2, 1, 4H)
        h0 = h0_all[2 * l:2 * l + 2].astype(jnp.float32)
        c0 = c0_all[2 * l:2 * l + 2].astype(jnp.float32)

        t_chunk = _choose_t_chunk(T, B, D_in, H)
        x_2d = layer_input.reshape(T * B, D_in)      # contiguous row-major, free
        out2, hn2, cn2 = _bilstm_layer(x_2d, w_ih_t, w_hh_t, bias, h0, c0,
                                       T=T, t_chunk=t_chunk)
        h_n.append(hn2)
        c_n.append(cn2)
        # (2, T, B, H) -> (T, B, 2H): forward half then backward half (PyTorch order).
        layer_input = jnp.concatenate([out2[0], out2[1]], axis=-1)

    output = jnp.transpose(layer_input, (1, 0, 2))               # (B, T, 2H)
    return output, (jnp.concatenate(h_n, axis=0), jnp.concatenate(c_n, axis=0))


# ----------------------------------------------------------------------------------
# Pure-JAX reference (for correctness check only)
# ----------------------------------------------------------------------------------
def _ref_lstm_direction(x_tbd, w_ih, w_hh, b_ih, b_hh, h0, c0):
    H = h0.shape[-1]

    def step(carry, x_t):
        h, c = carry
        gates = x_t @ w_ih.T + h @ w_hh.T + b_ih + b_hh
        i = jax.nn.sigmoid(gates[:, 0 * H:1 * H])
        f = jax.nn.sigmoid(gates[:, 1 * H:2 * H])
        g = jnp.tanh(gates[:, 2 * H:3 * H])
        o = jax.nn.sigmoid(gates[:, 3 * H:4 * H])
        c = f * c + i * g
        h = o * jnp.tanh(c)
        return (h, c), h

    (h, c), out = lax.scan(step, (h0, c0), x_tbd)
    return out, h, c


def ref_encoder_lstm_forward(inputs, hidden, params, num_layers, hidden_size):
    h0_all, c0_all = hidden
    x = jnp.transpose(inputs, (1, 0, 2)).astype(jnp.float32)
    h_n, c_n = [], []
    layer_input = x
    for l in range(num_layers):
        dir_outs = []
        for d in range(2):
            idx = l * 2 + d
            w_ih, w_hh, b_ih, b_hh = params[idx]
            xi = layer_input if d == 0 else layer_input[::-1]
            out, hn, cn = _ref_lstm_direction(
                xi, w_ih, w_hh, b_ih, b_hh, h0_all[idx], c0_all[idx])
            if d == 1:
                out = out[::-1]
            dir_outs.append(out)
            h_n.append(hn)
            c_n.append(cn)
        layer_input = jnp.concatenate(dir_outs, axis=-1)
    output = jnp.transpose(layer_input, (1, 0, 2))
    return output, (jnp.stack(h_n), jnp.stack(c_n))


# ----------------------------------------------------------------------------------
# Deterministic parameter init (same shapes/distribution as nn.LSTM defaults)
# ----------------------------------------------------------------------------------
def init_lstm_params(key, input_size, hidden_size, num_layers):
    k = 1.0 / np.sqrt(hidden_size)
    params = []
    for l in range(num_layers):
        in_sz = input_size if l == 0 else 2 * hidden_size
        for _d in range(2):
            key, k1, k2, k3, k4 = jax.random.split(key, 5)
            w_ih = jax.random.uniform(k1, (4 * hidden_size, in_sz),
                                      jnp.float32, -k, k)
            w_hh = jax.random.uniform(k2, (4 * hidden_size, hidden_size),
                                      jnp.float32, -k, k)
            b_ih = jax.random.uniform(k3, (4 * hidden_size,),
                                      jnp.float32, -k, k)
            b_hh = jax.random.uniform(k4, (4 * hidden_size,),
                                      jnp.float32, -k, k)
            params.append((w_ih, w_hh, b_ih, b_hh))
    return params


if __name__ == "__main__":
    # Small shapes consistent with the module:
    #   CNN row slice: batch x width x D; hidden: (num_layers*2, batch, hidden)
    batch, width, input_size, hidden_size, num_layers = 2, 8, 64, 32, 2

    key = jax.random.PRNGKey(0)
    k_in, k_params = jax.random.split(key)

    inputs = jax.random.normal(k_in, (batch, width, input_size), jnp.float32)
    # init_hidden(): zeros of shape (num_layers*2, batch, hidden) for h0 and c0
    h0 = jnp.zeros((num_layers * 2, batch, hidden_size), jnp.float32)
    c0 = jnp.zeros((num_layers * 2, batch, hidden_size), jnp.float32)

    params = init_lstm_params(k_params, input_size, hidden_size, num_layers)

    fwd = jax.jit(functools.partial(encoder_lstm_forward,
                                    num_layers=num_layers,
                                    hidden_size=hidden_size))
    output, (h_n, c_n) = fwd(inputs, (h0, c0), params)
    jax.block_until_ready(output)
    jax.block_until_ready(h_n)
    jax.block_until_ready(c_n)

    # Sanity check against a pure-JAX reference of nn.LSTM semantics.
    ref_out, (ref_hn, ref_cn) = ref_encoder_lstm_forward(
        inputs, (h0, c0), params, num_layers, hidden_size)
    np.testing.assert_allclose(np.asarray(output), np.asarray(ref_out),
                               rtol=1e-5, atol=1e-5)
    np.testing.assert_allclose(np.asarray(h_n), np.asarray(ref_hn),
                               rtol=1e-5, atol=1e-5)
    np.testing.assert_allclose(np.asarray(c_n), np.asarray(ref_cn),
                               rtol=1e-5, atol=1e-5)

    assert output.shape == (batch, width, 2 * hidden_size)
    assert h_n.shape == (num_layers * 2, batch, hidden_size)
    assert c_n.shape == (num_layers * 2, batch, hidden_size)

    print("KERNEL_OK")
</pallas_src>

<mosaic_0001>
module attributes {stable_mosaic.version = 11 : i64} {
  func.func @_bilstm_layer_kernel(%arg0: i32, %arg1: i32, %arg2: memref<16x64xf32, #tpu.memory_space<vmem>>, %arg3: memref<1x64x128xf32, #tpu.memory_space<vmem>>, %arg4: memref<1x32x128xf32, #tpu.memory_space<vmem>>, %arg5: memref<1x1x128xf32, #tpu.memory_space<vmem>>, %arg6: memref<1x2x32xf32, #tpu.memory_space<vmem>>, %arg7: memref<1x2x32xf32, #tpu.memory_space<vmem>>, %arg8: memref<1x8x2x32xf32, #tpu.memory_space<vmem>>, %arg9: memref<1x2x32xf32, #tpu.memory_space<vmem>>, %arg10: memref<1x2x32xf32, #tpu.memory_space<vmem>>, %arg11: memref<2x32xf32, #tpu.memory_space<vmem>>, %arg12: memref<2x32xf32, #tpu.memory_space<vmem>>, %arg13: memref<16x128xf32, #tpu.memory_space<vmem>>) attributes {dimension_semantics = [#tpu.dimension_semantics<parallel>, #tpu.dimension_semantics<arbitrary>], iteration_bounds = array<i64: 2, 1>, scalar_prefetch = 0 : i64, scratch_operands = 3 : i64, tpu.core_type = #tpu.core_type<tc>, window_params = [{transform_indices = @transform_0, window_bounds = array<i64: 16, 64>}, {transform_indices = @transform_1, window_bounds = array<i64: 1, 64, 128>}, {transform_indices = @transform_2, window_bounds = array<i64: 1, 32, 128>}, {transform_indices = @transform_3, window_bounds = array<i64: 1, 1, 128>}, {transform_indices = @transform_4, window_bounds = array<i64: 1, 2, 32>}, {transform_indices = @transform_5, window_bounds = array<i64: 1, 2, 32>}, {transform_indices = @transform_6, window_bounds = array<i64: 1, 8, 2, 32>}, {transform_indices = @transform_7, window_bounds = array<i64: 1, 2, 32>}, {transform_indices = @transform_8, window_bounds = array<i64: 1, 2, 32>}]} {
    %c0_i32 = arith.constant 0 : i32
    %0 = arith.cmpi eq, %arg1, %c0_i32 : i32
    %1 = arith.extui %0 : i1 to i32
    %c0_i32_0 = arith.constant 0 : i32
    %2 = arith.cmpi ne, %1, %c0_i32_0 : i32
    scf.if %2 {
      %c0_168 = arith.constant 0 : index
      %c0_169 = arith.constant 0 : index
      %c0_170 = arith.constant 0 : index
      %361 = vector.load %arg6[%c0_168, %c0_169, %c0_170] : memref<1x2x32xf32, #tpu.memory_space<vmem>>, vector<1x2x32xf32>
      %362 = vector.shape_cast %361 : vector<1x2x32xf32> to vector<2x32xf32>
      %c0_171 = arith.constant 0 : index
      %c0_172 = arith.constant 0 : index
      %363 = vector.load %arg11[%c0_171, %c0_172] : memref<2x32xf32, #tpu.memory_space<vmem>>, vector<2x32xf32>
      tpu.vector_store %arg11[%c0_171, %c0_172], %362 {strides = array<i32>} : memref<2x32xf32, #tpu.memory_space<vmem>>, vector<2x32xf32>,
      %c0_173 = arith.constant 0 : index
      %c0_174 = arith.constant 0 : index
      %c0_175 = arith.constant 0 : index
      %364 = vector.load %arg7[%c0_173, %c0_174, %c0_175] : memref<1x2x32xf32, #tpu.memory_space<vmem>>, vector<1x2x32xf32>
      %365 = vector.shape_cast %364 : vector<1x2x32xf32> to vector<2x32xf32>
      %c0_176 = arith.constant 0 : index
      %c0_177 = arith.constant 0 : index
      %366 = vector.load %arg12[%c0_176, %c0_177] : memref<2x32xf32, #tpu.memory_space<vmem>>, vector<2x32xf32>
      tpu.vector_store %arg12[%c0_176, %c0_177], %365 {strides = array<i32>} : memref<2x32xf32, #tpu.memory_space<vmem>>, vector<2x32xf32>,
    } else {
    }
    %c0 = arith.constant 0 : index
    %c0_1 = arith.constant 0 : index
    %3 = vector.load %arg2[%c0, %c0_1] : memref<16x64xf32, #tpu.memory_space<vmem>>, vector<16x64xf32>
    %c0_2 = arith.constant 0 : index
    %c0_3 = arith.constant 0 : index
    %c0_4 = arith.constant 0 : index
    %4 = vector.load %arg3[%c0_2, %c0_3, %c0_4] : memref<1x64x128xf32, #tpu.memory_space<vmem>>, vector<1x64x128xf32>
    %5 = vector.shape_cast %4 : vector<1x64x128xf32> to vector<64x128xf32>
    %cst = arith.constant dense<0.000000e+00> : vector<16x128xf32>
    %6 = tpu.matmul %3, %5, %cst {dimension_numbers = #tpu.dot_dimension_numbers<[1], [0], [0], [1], [0, 0, 1, 1], [], []>} : vector<16x64xf32>, vector<64x128xf32>, vector<16x128xf32> -> vector<16x128xf32>
    %c0_5 = arith.constant 0 : index
    %c0_6 = arith.constant 0 : index
    %c0_7 = arith.constant 0 : index
    %7 = vector.load %arg5[%c0_5, %c0_6, %c0_7] : memref<1x1x128xf32, #tpu.memory_space<vmem>>, vector<1x1x128xf32>
    %8 = vector.shape_cast %7 : vector<1x1x128xf32> to vector<1x128xf32>
    %9 = vector.broadcast %8 : vector<1x128xf32> to vector<16x128xf32>
    %10 = arith.addf %6, %9 : vector<16x128xf32>
    %c0_8 = arith.constant 0 : index
    %c0_9 = arith.constant 0 : index
    %11 = vector.load %arg13[%c0_8, %c0_9] : memref<16x128xf32, #tpu.memory_space<vmem>>, vector<16x128xf32>
    tpu.vector_store %arg13[%c0_8, %c0_9], %10 {strides = array<i32>} : memref<16x128xf32, #tpu.memory_space<vmem>>, vector<16x128xf32>,
    %c0_10 = arith.constant 0 : index
    %c0_11 = arith.constant 0 : index
    %c0_12 = arith.constant 0 : index
    %12 = vector.load %arg4[%c0_10, %c0_11, %c0_12] : memref<1x32x128xf32, #tpu.memory_space<vmem>>, vector<1x32x128xf32>
    %13 = vector.shape_cast %12 : vector<1x32x128xf32> to vector<32x128xf32>
    %c0_i32_13 = arith.constant 0 : i32
    %c1_i32 = arith.constant 1 : i32
    %14 = arith.subi %c1_i32, %arg0 : i32
    %15 = arith.muli %14, %c0_i32_13 : i32
    %c7_i32 = arith.constant 7 : i32
    %16 = arith.subi %c7_i32, %c0_i32_13 : i32
    %17 = arith.muli %arg0, %16 : i32
    %18 = arith.addi %15, %17 : i32
    %c2_i32 = arith.constant 2 : i32
    %19 = arith.muli %18, %c2_i32 : i32
    %20 = arith.index_cast %19 : i32 to index
    %c0_14 = arith.constant 0 : index
    %21 = vector.load %arg13[%20, %c0_14] : memref<16x128xf32, #tpu.memory_space<vmem>>, vector<2x128xf32>
    %c0_15 = arith.constant 0 : index
    %c0_16 = arith.constant 0 : index
    %22 = vector.load %arg11[%c0_15, %c0_16] : memref<2x32xf32, #tpu.memory_space<vmem>>, vector<2x32xf32>
    %cst_17 = arith.constant dense<0.000000e+00> : vector<2x128xf32>
    %23 = tpu.matmul %22, %13, %cst_17 {dimension_numbers = #tpu.dot_dimension_numbers<[1], [0], [0], [1], [0, 0, 1, 1], [], []>} : vector<2x32xf32>, vector<32x128xf32>, vector<2x128xf32> -> vector<2x128xf32>
    %24 = arith.addf %21, %23 : vector<2x128xf32>
    %25 = vector.extract_strided_slice %24 {offsets = [0, 0], sizes = [2, 32], strides = [1, 1]} : vector<2x128xf32> to vector<2x32xf32>
    %26 = arith.negf %25 : vector<2x32xf32>
    %27 = math.exp %26 : vector<2x32xf32>
    %cst_18 = arith.constant 1.000000e+00 : f32
    %28 = vector.broadcast %cst_18 : f32 to vector<2x32xf32>
    %29 = arith.addf %28, %27 : vector<2x32xf32>
    %30 = arith.divf %28, %29 : vector<2x32xf32>
    %31 = vector.extract_strided_slice %24 {offsets = [0, 32], sizes = [2, 32], strides = [1, 1]} : vector<2x128xf32> to vector<2x32xf32>
    %32 = arith.negf %31 : vector<2x32xf32>
    %33 = math.exp %32 : vector<2x32xf32>
    %cst_19 = arith.constant 1.000000e+00 : f32
    %34 = vector.broadcast %cst_19 : f32 to vector<2x32xf32>
    %35 = arith.addf %34, %33 : vector<2x32xf32>
    %36 = arith.divf %34, %35 : vector<2x32xf32>
    %37 = vector.extract_strided_slice %24 {offsets = [0, 64], sizes = [2, 32], strides = [1, 1]} : vector<2x128xf32> to vector<2x32xf32>
    %38 = math.tanh %37 : vector<2x32xf32>
    %39 = vector.extract_strided_slice %24 {offsets = [0, 96], sizes = [2, 32], strides = [1, 1]} : vector<2x128xf32> to vector<2x32xf32>
    %40 = arith.negf %39 : vector<2x32xf32>
    %41 = math.exp %40 : vector<2x32xf32>
    %cst_20 = arith.constant 1.000000e+00 : f32
    %42 = vector.broadcast %cst_20 : f32 to vector<2x32xf32>
    %43 = arith.addf %42, %41 : vector<2x32xf32>
    %44 = arith.divf %42, %43 : vector<2x32xf32>
    %c0_21 = arith.constant 0 : index
    %c0_22 = arith.constant 0 : index
    %45 = vector.load %arg12[%c0_21, %c0_22] : memref<2x32xf32, #tpu.memory_space<vmem>>, vector<2x32xf32>
    %46 = arith.mulf %36, %45 : vector<2x32xf32>
    %47 = arith.mulf %30, %38 : vector<2x32xf32>
    %48 = arith.addf %46, %47 : vector<2x32xf32>
    %49 = math.tanh %48 : vector<2x32xf32>
    %50 = arith.mulf %44, %49 : vector<2x32xf32>
    %c0_23 = arith.constant 0 : index
    %c0_24 = arith.constant 0 : index
    %51 = vector.load %arg12[%c0_23, %c0_24] : memref<2x32xf32, #tpu.memory_space<vmem>>, vector<2x32xf32>
    tpu.vector_store %arg12[%c0_23, %c0_24], %48 {strides = array<i32>} : memref<2x32xf32, #tpu.memory_space<vmem>>, vector<2x32xf32>,
    %c0_25 = arith.constant 0 : index
    %c0_26 = arith.constant 0 : index
    %52 = vector.load %arg11[%c0_25, %c0_26] : memref<2x32xf32, #tpu.memory_space<vmem>>, vector<2x32xf32>
    tpu.vector_store %arg11[%c0_25, %c0_26], %50 {strides = array<i32>} : memref<2x32xf32, #tpu.memory_space<vmem>>, vector<2x32xf32>,
    %c0_27 = arith.constant 0 : index
    %53 = arith.index_cast %18 : i32 to index
    %c0_28 = arith.constant 0 : index
    %c0_29 = arith.constant 0 : index
    %54 = vector.load %arg8[%c0_27, %53, %c0_28, %c0_29] : memref<1x8x2x32xf32, #tpu.memory_space<vmem>>, vector<1x1x2x32xf32>
    %55 = vector.shape_cast %54 : vector<1x1x2x32xf32> to vector<2x32xf32>
    %56 = vector.shape_cast %50 : vector<2x32xf32> to vector<1x1x2x32xf32>
    tpu.vector_store %arg8[%c0_27, %53, %c0_28, %c0_29], %56 {strides = array<i32>} : memref<1x8x2x32xf32, #tpu.memory_space<vmem>>, vector<1x1x2x32xf32>,
    %c1_i32_30 = arith.constant 1 : i32
    %c1_i32_31 = arith.constant 1 : i32
    %57 = arith.subi %c1_i32_31, %arg0 : i32
    %58 = arith.muli %57, %c1_i32_30 : i32
    %c7_i32_32 = arith.constant 7 : i32
    %59 = arith.subi %c7_i32_32, %c1_i32_30 : i32
    %60 = arith.muli %arg0, %59 : i32
    %61 = arith.addi %58, %60 : i32
    %c2_i32_33 = arith.constant 2 : i32
    %62 = arith.muli %61, %c2_i32_33 : i32
    %63 = arith.index_cast %62 : i32 to index
    %c0_34 = arith.constant 0 : index
    %64 = vector.load %arg13[%63, %c0_34] : memref<16x128xf32, #tpu.memory_space<vmem>>, vector<2x128xf32>
    %c0_35 = arith.constant 0 : index
    %c0_36 = arith.constant 0 : index
    %65 = vector.load %arg11[%c0_35, %c0_36] : memref<2x32xf32, #tpu.memory_space<vmem>>, vector<2x32xf32>
    %cst_37 = arith.constant dense<0.000000e+00> : vector<2x128xf32>
    %66 = tpu.matmul %65, %13, %cst_37 {dimension_numbers = #tpu.dot_dimension_numbers<[1], [0], [0], [1], [0, 0, 1, 1], [], []>} : vector<2x32xf32>, vector<32x128xf32>, vector<2x128xf32> -> vector<2x128xf32>
    %67 = arith.addf %64, %66 : vector<2x128xf32>
    %68 = vector.extract_strided_slice %67 {offsets = [0, 0], sizes = [2, 32], strides = [1, 1]} : vector<2x128xf32> to vector<2x32xf32>
    %69 = arith.negf %68 : vector<2x32xf32>
    %70 = math.exp %69 : vector<2x32xf32>
    %cst_38 = arith.constant 1.000000e+00 : f32
    %71 = vector.broadcast %cst_38 : f32 to vector<2x32xf32>
    %72 = arith.addf %71, %70 : vector<2x32xf32>
    %73 = arith.divf %71, %72 : vector<2x32xf32>
    %74 = vector.extract_strided_slice %67 {offsets = [0, 32], sizes = [2, 32], strides = [1, 1]} : vector<2x128xf32> to vector<2x32xf32>
    %75 = arith.negf %74 : vector<2x32xf32>
    %76 = math.exp %75 : vector<2x32xf32>
    %cst_39 = arith.constant 1.000000e+00 : f32
    %77 = vector.broadcast %cst_39 : f32 to vector<2x32xf32>
    %78 = arith.addf %77, %76 : vector<2x32xf32>
    %79 = arith.divf %77, %78 : vector<2x32xf32>
    %80 = vector.extract_strided_slice %67 {offsets = [0, 64], sizes = [2, 32], strides = [1, 1]} : vector<2x128xf32> to vector<2x32xf32>
    %81 = math.tanh %80 : vector<2x32xf32>
    %82 = vector.extract_strided_slice %67 {offsets = [0, 96], sizes = [2, 32], strides = [1, 1]} : vector<2x128xf32> to vector<2x32xf32>
    %83 = arith.negf %82 : vector<2x32xf32>
    %84 = math.exp %83 : vector<2x32xf32>
    %cst_40 = arith.constant 1.000000e+00 : f32
    %85 = vector.broadcast %cst_40 : f32 to vector<2x32xf32>
    %86 = arith.addf %85, %84 : vector<2x32xf32>
    %87 = arith.divf %85, %86 : vector<2x32xf32>
    %c0_41 = arith.constant 0 : index
    %c0_42 = arith.constant 0 : index
    %88 = vector.load %arg12[%c0_41, %c0_42] : memref<2x32xf32, #tpu.memory_space<vmem>>, vector<2x32xf32>
    %89 = arith.mulf %79, %88 : vector<2x32xf32>
    %90 = arith.mulf %73, %81 : vector<2x32xf32>
    %91 = arith.addf %89, %90 : vector<2x32xf32>
    %92 = math.tanh %91 : vector<2x32xf32>
    %93 = arith.mulf %87, %92 : vector<2x32xf32>
    %c0_43 = arith.constant 0 : index
    %c0_44 = arith.constant 0 : index
    %94 = vector.load %arg12[%c0_43, %c0_44] : memref<2x32xf32, #tpu.memory_space<vmem>>, vector<2x32xf32>
    tpu.vector_store %arg12[%c0_43, %c0_44], %91 {strides = array<i32>} : memref<2x32xf32, #tpu.memory_space<vmem>>, vector<2x32xf32>,
    %c0_45 = arith.constant 0 : index
    %c0_46 = arith.constant 0 : index
    %95 = vector.load %arg11[%c0_45, %c0_46] : memref<2x32xf32, #tpu.memory_space<vmem>>, vector<2x32xf32>
    tpu.vector_store %arg11[%c0_45, %c0_46], %93 {strides = array<i32>} : memref<2x32xf32, #tpu.memory_space<vmem>>, vector<2x32xf32>,
    %c0_47 = arith.constant 0 : index
    %96 = arith.index_cast %61 : i32 to index
    %c0_48 = arith.constant 0 : index
    %c0_49 = arith.constant 0 : index
    %97 = vector.load %arg8[%c0_47, %96, %c0_48, %c0_49] : memref<1x8x2x32xf32, #tpu.memory_space<vmem>>, vector<1x1x2x32xf32>
    %98 = vector.shape_cast %97 : vector<1x1x2x32xf32> to vector<2x32xf32>
    %99 = vector.shape_cast %93 : vector<2x32xf32> to vector<1x1x2x32xf32>
    tpu.vector_store %arg8[%c0_47, %96, %c0_48, %c0_49], %99 {strides = array<i32>} : memref<1x8x2x32xf32, #tpu.memory_space<vmem>>, vector<1x1x2x32xf32>,
    %c2_i32_50 = arith.constant 2 : i32
    %c1_i32_51 = arith.constant 1 : i32
    %100 = arith.subi %c1_i32_51, %arg0 : i32
    %101 = arith.muli %100, %c2_i32_50 : i32
    %c7_i32_52 = arith.constant 7 : i32
    %102 = arith.subi %c7_i32_52, %c2_i32_50 : i32
    %103 = arith.muli %arg0, %102 : i32
    %104 = arith.addi %101, %103 : i32
    %c2_i32_53 = arith.constant 2 : i32
    %105 = arith.muli %104, %c2_i32_53 : i32
    %106 = arith.index_cast %105 : i32 to index
    %c0_54 = arith.constant 0 : index
    %107 = vector.load %arg13[%106, %c0_54] : memref<16x128xf32, #tpu.memory_space<vmem>>, vector<2x128xf32>
    %c0_55 = arith.constant 0 : index
    %c0_56 = arith.constant 0 : index
    %108 = vector.load %arg11[%c0_55, %c0_56] : memref<2x32xf32, #tpu.memory_space<vmem>>, vector<2x32xf32>
    %cst_57 = arith.constant dense<0.000000e+00> : vector<2x128xf32>
    %109 = tpu.matmul %108, %13, %cst_57 {dimension_numbers = #tpu.dot_dimension_numbers<[1], [0], [0], [1], [0, 0, 1, 1], [], []>} : vector<2x32xf32>, vector<32x128xf32>, vector<2x128xf32> -> vector<2x128xf32>
    %110 = arith.addf %107, %109 : vector<2x128xf32>
    %111 = vector.extract_strided_slice %110 {offsets = [0, 0], sizes = [2, 32], strides = [1, 1]} : vector<2x128xf32> to vector<2x32xf32>
    %112 = arith.negf %111 : vector<2x32xf32>
    %113 = math.exp %112 : vector<2x32xf32>
    %cst_58 = arith.constant 1.000000e+00 : f32
    %114 = vector.broadcast %cst_58 : f32 to vector<2x32xf32>
    %115 = arith.addf %114, %113 : vector<2x32xf32>
    %116 = arith.divf %114, %115 : vector<2x32xf32>
    %117 = vector.extract_strided_slice %110 {offsets = [0, 32], sizes = [2, 32], strides = [1, 1]} : vector<2x128xf32> to vector<2x32xf32>
    %118 = arith.negf %117 : vector<2x32xf32>
    %119 = math.exp %118 : vector<2x32xf32>
    %cst_59 = arith.constant 1.000000e+00 : f32
    %120 = vector.broadcast %cst_59 : f32 to vector<2x32xf32>
    %121 = arith.addf %120, %119 : vector<2x32xf32>
    %122 = arith.divf %120, %121 : vector<2x32xf32>
    %123 = vector.extract_strided_slice %110 {offsets = [0, 64], sizes = [2, 32], strides = [1, 1]} : vector<2x128xf32> to vector<2x32xf32>
    %124 = math.tanh %123 : vector<2x32xf32>
    %125 = vector.extract_strided_slice %110 {offsets = [0, 96], sizes = [2, 32], strides = [1, 1]} : vector<2x128xf32> to vector<2x32xf32>
    %126 = arith.negf %125 : vector<2x32xf32>
    %127 = math.exp %126 : vector<2x32xf32>
    %cst_60 = arith.constant 1.000000e+00 : f32
    %128 = vector.broadcast %cst_60 : f32 to vector<2x32xf32>
    %129 = arith.addf %128, %127 : vector<2x32xf32>
    %130 = arith.divf %128, %129 : vector<2x32xf32>
    %c0_61 = arith.constant 0 : index
    %c0_62 = arith.constant 0 : index
    %131 = vector.load %arg12[%c0_61, %c0_62] : memref<2x32xf32, #tpu.memory_space<vmem>>, vector<2x32xf32>
    %132 = arith.mulf %122, %131 : vector<2x32xf32>
    %133 = arith.mulf %116, %124 : vector<2x32xf32>
    %134 = arith.addf %132, %133 : vector<2x32xf32>
    %135 = math.tanh %134 : vector<2x32xf32>
    %136 = arith.mulf %130, %135 : vector<2x32xf32>
    %c0_63 = arith.constant 0 : index
    %c0_64 = arith.constant 0 : index
    %137 = vector.load %arg12[%c0_63, %c0_64] : memref<2x32xf32, #tpu.memory_space<vmem>>, vector<2x32xf32>
    tpu.vector_store %arg12[%c0_63, %c0_64], %134 {strides = array<i32>} : memref<2x32xf32, #tpu.memory_space<vmem>>, vector<2x32xf32>,
    %c0_65 = arith.constant 0 : index
    %c0_66 = arith.constant 0 : index
    %138 = vector.load %arg11[%c0_65, %c0_66] : memref<2x32xf32, #tpu.memory_space<vmem>>, vector<2x32xf32>
    tpu.vector_store %arg11[%c0_65, %c0_66], %136 {strides = array<i32>} : memref<2x32xf32, #tpu.memory_space<vmem>>, vector<2x32xf32>,
    %c0_67 = arith.constant 0 : index
    %139 = arith.index_cast %104 : i32 to index
    %c0_68 = arith.constant 0 : index
    %c0_69 = arith.constant 0 : index
    %140 = vector.load %arg8[%c0_67, %139, %c0_68, %c0_69] : memref<1x8x2x32xf32, #tpu.memory_space<vmem>>, vector<1x1x2x32xf32>
    %141 = vector.shape_cast %140 : vector<1x1x2x32xf32> to vector<2x32xf32>
    %142 = vector.shape_cast %136 : vector<2x32xf32> to vector<1x1x2x32xf32>
    tpu.vector_store %arg8[%c0_67, %139, %c0_68, %c0_69], %142 {strides = array<i32>} : memref<1x8x2x32xf32, #tpu.memory_space<vmem>>, vector<1x1x2x32xf32>,
    %c3_i32 = arith.constant 3 : i32
    %c1_i32_70 = arith.constant 1 : i32
    %143 = arith.subi %c1_i32_70, %arg0 : i32
    %144 = arith.muli %143, %c3_i32 : i32
    %c7_i32_71 = arith.constant 7 : i32
    %145 = arith.subi %c7_i32_71, %c3_i32 : i32
    %146 = arith.muli %arg0, %145 : i32
    %147 = arith.addi %144, %146 : i32
    %c2_i32_72 = arith.constant 2 : i32
    %148 = arith.muli %147, %c2_i32_72 : i32
    %149 = arith.index_cast %148 : i32 to index
    %c0_73 = arith.constant 0 : index
    %150 = vector.load %arg13[%149, %c0_73] : memref<16x128xf32, #tpu.memory_space<vmem>>, vector<2x128xf32>
    %c0_74 = arith.constant 0 : index
    %c0_75 = arith.constant 0 : index
    %151 = vector.load %arg11[%c0_74, %c0_75] : memref<2x32xf32, #tpu.memory_space<vmem>>, vector<2x32xf32>
    %cst_76 = arith.constant dense<0.000000e+00> : vector<2x128xf32>
    %152 = tpu.matmul %151, %13, %cst_76 {dimension_numbers = #tpu.dot_dimension_numbers<[1], [0], [0], [1], [0, 0, 1, 1], [], []>} : vector<2x32xf32>, vector<32x128xf32>, vector<2x128xf32> -> vector<2x128xf32>
    %153 = arith.addf %150, %152 : vector<2x128xf32>
    %154 = vector.extract_strided_slice %153 {offsets = [0, 0], sizes = [2, 32], strides = [1, 1]} : vector<2x128xf32> to vector<2x32xf32>
    %155 = arith.negf %154 : vector<2x32xf32>
    %156 = math.exp %155 : vector<2x32xf32>
    %cst_77 = arith.constant 1.000000e+00 : f32
    %157 = vector.broadcast %cst_77 : f32 to vector<2x32xf32>
    %158 = arith.addf %157, %156 : vector<2x32xf32>
    %159 = arith.divf %157, %158 : vector<2x32xf32>
    %160 = vector.extract_strided_slice %153 {offsets = [0, 32], sizes = [2, 32], strides = [1, 1]} : vector<2x128xf32> to vector<2x32xf32>
    %161 = arith.negf %160 : vector<2x32xf32>
    %162 = math.exp %161 : vector<2x32xf32>
    %cst_78 = arith.constant 1.000000e+00 : f32
    %163 = vector.broadcast %cst_78 : f32 to vector<2x32xf32>
    %164 = arith.addf %163, %162 : vector<2x32xf32>
    %165 = arith.divf %163, %164 : vector<2x32xf32>
    %166 = vector.extract_strided_slice %153 {offsets = [0, 64], sizes = [2, 32], strides = [1, 1]} : vector<2x128xf32> to vector<2x32xf32>
    %167 = math.tanh %166 : vector<2x32xf32>
    %168 = vector.extract_strided_slice %153 {offsets = [0, 96], sizes = [2, 32], strides = [1, 1]} : vector<2x128xf32> to vector<2x32xf32>
    %169 = arith.negf %168 : vector<2x32xf32>
    %170 = math.exp %169 : vector<2x32xf32>
    %cst_79 = arith.constant 1.000000e+00 : f32
    %171 = vector.broadcast %cst_79 : f32 to vector<2x32xf32>
    %172 = arith.addf %171, %170 : vector<2x32xf32>
    %173 = arith.divf %171, %172 : vector<2x32xf32>
    %c0_80 = arith.constant 0 : index
    %c0_81 = arith.constant 0 : index
    %174 = vector.load %arg12[%c0_80, %c0_81] : memref<2x32xf32, #tpu.memory_space<vmem>>, vector<2x32xf32>
    %175 = arith.mulf %165, %174 : vector<2x32xf32>
    %176 = arith.mulf %159, %167 : vector<2x32xf32>
    %177 = arith.addf %175, %176 : vector<2x32xf32>
    %178 = math.tanh %177 : vector<2x32xf32>
    %179 = arith.mulf %173, %178 : vector<2x32xf32>
    %c0_82 = arith.constant 0 : index
    %c0_83 = arith.constant 0 : index
    %180 = vector.load %arg12[%c0_82, %c0_83] : memref<2x32xf32, #tpu.memory_space<vmem>>, vector<2x32xf32>
    tpu.vector_store %arg12[%c0_82, %c0_83], %177 {strides = array<i32>} : memref<2x32xf32, #tpu.memory_space<vmem>>, vector<2x32xf32>,
    %c0_84 = arith.constant 0 : index
    %c0_85 = arith.constant 0 : index
    %181 = vector.load %arg11[%c0_84, %c0_85] : memref<2x32xf32, #tpu.memory_space<vmem>>, vector<2x32xf32>
    tpu.vector_store %arg11[%c0_84, %c0_85], %179 {strides = array<i32>} : memref<2x32xf32, #tpu.memory_space<vmem>>, vector<2x32xf32>,
    %c0_86 = arith.constant 0 : index
    %182 = arith.index_cast %147 : i32 to index
    %c0_87 = arith.constant 0 : index
    %c0_88 = arith.constant 0 : index
    %183 = vector.load %arg8[%c0_86, %182, %c0_87, %c0_88] : memref<1x8x2x32xf32, #tpu.memory_space<vmem>>, vector<1x1x2x32xf32>
    %184 = vector.shape_cast %183 : vector<1x1x2x32xf32> to vector<2x32xf32>
    %185 = vector.shape_cast %179 : vector<2x32xf32> to vector<1x1x2x32xf32>
    tpu.vector_store %arg8[%c0_86, %182, %c0_87, %c0_88], %185 {strides = array<i32>} : memref<1x8x2x32xf32, #tpu.memory_space<vmem>>, vector<1x1x2x32xf32>,
    %c4_i32 = arith.constant 4 : i32
    %c1_i32_89 = arith.constant 1 : i32
    %186 = arith.subi %c1_i32_89, %arg0 : i32
    %187 = arith.muli %186, %c4_i32 : i32
    %c7_i32_90 = arith.constant 7 : i32
    %188 = arith.subi %c7_i32_90, %c4_i32 : i32
    %189 = arith.muli %arg0, %188 : i32
    %190 = arith.addi %187, %189 : i32
    %c2_i32_91 = arith.constant 2 : i32
    %191 = arith.muli %190, %c2_i32_91 : i32
    %192 = arith.index_cast %191 : i32 to index
    %c0_92 = arith.constant 0 : index
    %193 = vector.load %arg13[%192, %c0_92] : memref<16x128xf32, #tpu.memory_space<vmem>>, vector<2x128xf32>
    %c0_93 = arith.constant 0 : index
    %c0_94 = arith.constant 0 : index
    %194 = vector.load %arg11[%c0_93, %c0_94] : memref<2x32xf32, #tpu.memory_space<vmem>>, vector<2x32xf32>
    %cst_95 = arith.constant dense<0.000000e+00> : vector<2x128xf32>
    %195 = tpu.matmul %194, %13, %cst_95 {dimension_numbers = #tpu.dot_dimension_numbers<[1], [0], [0], [1], [0, 0, 1, 1], [], []>} : vector<2x32xf32>, vector<32x128xf32>, vector<2x128xf32> -> vector<2x128xf32>
    %196 = arith.addf %193, %195 : vector<2x128xf32>
    %197 = vector.extract_strided_slice %196 {offsets = [0, 0], sizes = [2, 32], strides = [1, 1]} : vector<2x128xf32> to vector<2x32xf32>
    %198 = arith.negf %197 : vector<2x32xf32>
    %199 = math.exp %198 : vector<2x32xf32>
    %cst_96 = arith.constant 1.000000e+00 : f32
    %200 = vector.broadcast %cst_96 : f32 to vector<2x32xf32>
    %201 = arith.addf %200, %199 : vector<2x32xf32>
    %202 = arith.divf %200, %201 : vector<2x32xf32>
    %203 = vector.extract_strided_slice %196 {offsets = [0, 32], sizes = [2, 32], strides = [1, 1]} : vector<2x128xf32> to vector<2x32xf32>
    %204 = arith.negf %203 : vector<2x32xf32>
    %205 = math.exp %204 : vector<2x32xf32>
    %cst_97 = arith.constant 1.000000e+00 : f32
    %206 = vector.broadcast %cst_97 : f32 to vector<2x32xf32>
    %207 = arith.addf %206, %205 : vector<2x32xf32>
    %208 = arith.divf %206, %207 : vector<2x32xf32>
    %209 = vector.extract_strided_slice %196 {offsets = [0, 64], sizes = [2, 32], strides = [1, 1]} : vector<2x128xf32> to vector<2x32xf32>
    %210 = math.tanh %209 : vector<2x32xf32>
    %211 = vector.extract_strided_slice %196 {offsets = [0, 96], sizes = [2, 32], strides = [1, 1]} : vector<2x128xf32> to vector<2x32xf32>
    %212 = arith.negf %211 : vector<2x32xf32>
    %213 = math.exp %212 : vector<2x32xf32>
    %cst_98 = arith.constant 1.000000e+00 : f32
    %214 = vector.broadcast %cst_98 : f32 to vector<2x32xf32>
    %215 = arith.addf %214, %213 : vector<2x32xf32>
    %216 = arith.divf %214, %215 : vector<2x32xf32>
    %c0_99 = arith.constant 0 : index
    %c0_100 = arith.constant 0 : index
    %217 = vector.load %arg12[%c0_99, %c0_100] : memref<2x32xf32, #tpu.memory_space<vmem>>, vector<2x32xf32>
    %218 = arith.mulf %208, %217 : vector<2x32xf32>
    %219 = arith.mulf %202, %210 : vector<2x32xf32>
    %220 = arith.addf %218, %219 : vector<2x32xf32>
    %221 = math.tanh %220 : vector<2x32xf32>
    %222 = arith.mulf %216, %221 : vector<2x32xf32>
    %c0_101 = arith.constant 0 : index
    %c0_102 = arith.constant 0 : index
    %223 = vector.load %arg12[%c0_101, %c0_102] : memref<2x32xf32, #tpu.memory_space<vmem>>, vector<2x32xf32>
    tpu.vector_store %arg12[%c0_101, %c0_102], %220 {strides = array<i32>} : memref<2x32xf32, #tpu.memory_space<vmem>>, vector<2x32xf32>,
    %c0_103 = arith.constant 0 : index
    %c0_104 = arith.constant 0 : index
    %224 = vector.load %arg11[%c0_103, %c0_104] : memref<2x32xf32, #tpu.memory_space<vmem>>, vector<2x32xf32>
    tpu.vector_store %arg11[%c0_103, %c0_104], %222 {strides = array<i32>} : memref<2x32xf32, #tpu.memory_space<vmem>>, vector<2x32xf32>,
    %c0_105 = arith.constant 0 : index
    %225 = arith.index_cast %190 : i32 to index
    %c0_106 = arith.constant 0 : index
    %c0_107 = arith.constant 0 : index
    %226 = vector.load %arg8[%c0_105, %225, %c0_106, %c0_107] : memref<1x8x2x32xf32, #tpu.memory_space<vmem>>, vector<1x1x2x32xf32>
    %227 = vector.shape_cast %226 : vector<1x1x2x32xf32> to vector<2x32xf32>
    %228 = vector.shape_cast %222 : vector<2x32xf32> to vector<1x1x2x32xf32>
    tpu.vector_store %arg8[%c0_105, %225, %c0_106, %c0_107], %228 {strides = array<i32>} : memref<1x8x2x32xf32, #tpu.memory_space<vmem>>, vector<1x1x2x32xf32>,
    %c5_i32 = arith.constant 5 : i32
    %c1_i32_108 = arith.constant 1 : i32
    %229 = arith.subi %c1_i32_108, %arg0 : i32
    %230 = arith.muli %229, %c5_i32 : i32
    %c7_i32_109 = arith.constant 7 : i32
    %231 = arith.subi %c7_i32_109, %c5_i32 : i32
    %232 = arith.muli %arg0, %231 : i32
    %233 = arith.addi %230, %232 : i32
    %c2_i32_110 = arith.constant 2 : i32
    %234 = arith.muli %233, %c2_i32_110 : i32
    %235 = arith.index_cast %234 : i32 to index
    %c0_111 = arith.constant 0 : index
    %236 = vector.load %arg13[%235, %c0_111] : memref<16x128xf32, #tpu.memory_space<vmem>>, vector<2x128xf32>
    %c0_112 = arith.constant 0 : index
    %c0_113 = arith.constant 0 : index
    %237 = vector.load %arg11[%c0_112, %c0_113] : memref<2x32xf32, #tpu.memory_space<vmem>>, vector<2x32xf32>
    %cst_114 = arith.constant dense<0.000000e+00> : vector<2x128xf32>
    %238 = tpu.matmul %237, %13, %cst_114 {dimension_numbers = #tpu.dot_dimension_numbers<[1], [0], [0], [1], [0, 0, 1, 1], [], []>} : vector<2x32xf32>, vector<32x128xf32>, vector<2x128xf32> -> vector<2x128xf32>
    %239 = arith.addf %236, %238 : vector<2x128xf32>
    %240 = vector.extract_strided_slice %239 {offsets = [0, 0], sizes = [2, 32], strides = [1, 1]} : vector<2x128xf32> to vector<2x32xf32>
    %241 = arith.negf %240 : vector<2x32xf32>
    %242 = math.exp %241 : vector<2x32xf32>
    %cst_115 = arith.constant 1.000000e+00 : f32
    %243 = vector.broadcast %cst_115 : f32 to vector<2x32xf32>
    %244 = arith.addf %243, %242 : vector<2x32xf32>
    %245 = arith.divf %243, %244 : vector<2x32xf32>
    %246 = vector.extract_strided_slice %239 {offsets = [0, 32], sizes = [2, 32], strides = [1, 1]} : vector<2x128xf32> to vector<2x32xf32>
    %247 = arith.negf %246 : vector<2x32xf32>
    %248 = math.exp %247 : vector<2x32xf32>
    %cst_116 = arith.constant 1.000000e+00 : f32
    %249 = vector.broadcast %cst_116 : f32 to vector<2x32xf32>
    %250 = arith.addf %249, %248 : vector<2x32xf32>
    %251 = arith.divf %249, %250 : vector<2x32xf32>
    %252 = vector.extract_strided_slice %239 {offsets = [0, 64], sizes = [2, 32], strides = [1, 1]} : vector<2x128xf32> to vector<2x32xf32>
    %253 = math.tanh %252 : vector<2x32xf32>
    %254 = vector.extract_strided_slice %239 {offsets = [0, 96], sizes = [2, 32], strides = [1, 1]} : vector<2x128xf32> to vector<2x32xf32>
    %255 = arith.negf %254 : vector<2x32xf32>
    %256 = math.exp %255 : vector<2x32xf32>
    %cst_117 = arith.constant 1.000000e+00 : f32
    %257 = vector.broadcast %cst_117 : f32 to vector<2x32xf32>
    %258 = arith.addf %257, %256 : vector<2x32xf32>
    %259 = arith.divf %257, %258 : vector<2x32xf32>
    %c0_118 = arith.constant 0 : index
    %c0_119 = arith.constant 0 : index
    %260 = vector.load %arg12[%c0_118, %c0_119] : memref<2x32xf32, #tpu.memory_space<vmem>>, vector<2x32xf32>
    %261 = arith.mulf %251, %260 : vector<2x32xf32>
    %262 = arith.mulf %245, %253 : vector<2x32xf32>
    %263 = arith.addf %261, %262 : vector<2x32xf32>
    %264 = math.tanh %263 : vector<2x32xf32>
    %265 = arith.mulf %259, %264 : vector<2x32xf32>
    %c0_120 = arith.constant 0 : index
    %c0_121 = arith.constant 0 : index
    %266 = vector.load %arg12[%c0_120, %c0_121] : memref<2x32xf32, #tpu.memory_space<vmem>>, vector<2x32xf32>
    tpu.vector_store %arg12[%c0_120, %c0_121], %263 {strides = array<i32>} : memref<2x32xf32, #tpu.memory_space<vmem>>, vector<2x32xf32>,
    %c0_122 = arith.constant 0 : index
    %c0_123 = arith.constant 0 : index
    %267 = vector.load %arg11[%c0_122, %c0_123] : memref<2x32xf32, #tpu.memory_space<vmem>>, vector<2x32xf32>
    tpu.vector_store %arg11[%c0_122, %c0_123], %265 {strides = array<i32>} : memref<2x32xf32, #tpu.memory_space<vmem>>, vector<2x32xf32>,
    %c0_124 = arith.constant 0 : index
    %268 = arith.index_cast %233 : i32 to index
    %c0_125 = arith.constant 0 : index
    %c0_126 = arith.constant 0 : index
    %269 = vector.load %arg8[%c0_124, %268, %c0_125, %c0_126] : memref<1x8x2x32xf32, #tpu.memory_space<vmem>>, vector<1x1x2x32xf32>
    %270 = vector.shape_cast %269 : vector<1x1x2x32xf32> to vector<2x32xf32>
    %271 = vector.shape_cast %265 : vector<2x32xf32> to vector<1x1x2x32xf32>
    tpu.vector_store %arg8[%c0_124, %268, %c0_125, %c0_126], %271 {strides = array<i32>} : memref<1x8x2x32xf32, #tpu.memory_space<vmem>>, vector<1x1x2x32xf32>,
    %c6_i32 = arith.constant 6 : i32
    %c1_i32_127 = arith.constant 1 : i32
    %272 = arith.subi %c1_i32_127, %arg0 : i32
    %273 = arith.muli %272, %c6_i32 : i32
    %c7_i32_128 = arith.constant 7 : i32
    %274 = arith.subi %c7_i32_128, %c6_i32 : i32
    %275 = arith.muli %arg0, %274 : i32
    %276 = arith.addi %273, %275 : i32
    %c2_i32_129 = arith.constant 2 : i32
    %277 = arith.muli %276, %c2_i32_129 : i32
    %278 = arith.index_cast %277 : i32 to index
    %c0_130 = arith.constant 0 : index
    %279 = vector.load %arg13[%278, %c0_130] : memref<16x128xf32, #tpu.memory_space<vmem>>, vector<2x128xf32>
    %c0_131 = arith.constant 0 : index
    %c0_132 = arith.constant 0 : index
    %280 = vector.load %arg11[%c0_131, %c0_132] : memref<2x32xf32, #tpu.memory_space<vmem>>, vector<2x32xf32>
    %cst_133 = arith.constant dense<0.000000e+00> : vector<2x128xf32>
    %281 = tpu.matmul %280, %13, %cst_133 {dimension_numbers = #tpu.dot_dimension_numbers<[1], [0], [0], [1], [0, 0, 1, 1], [], []>} : vector<2x32xf32>, vector<32x128xf32>, vector<2x128xf32> -> vector<2x128xf32>
    %282 = arith.addf %279, %281 : vector<2x128xf32>
    %283 = vector.extract_strided_slice %282 {offsets = [0, 0], sizes = [2, 32], strides = [1, 1]} : vector<2x128xf32> to vector<2x32xf32>
    %284 = arith.negf %283 : vector<2x32xf32>
    %285 = math.exp %284 : vector<2x32xf32>
    %cst_134 = arith.constant 1.000000e+00 : f32
    %286 = vector.broadcast %cst_134 : f32 to vector<2x32xf32>
    %287 = arith.addf %286, %285 : vector<2x32xf32>
    %288 = arith.divf %286, %287 : vector<2x32xf32>
    %289 = vector.extract_strided_slice %282 {offsets = [0, 32], sizes = [2, 32], strides = [1, 1]} : vector<2x128xf32> to vector<2x32xf32>
    %290 = arith.negf %289 : vector<2x32xf32>
    %291 = math.exp %290 : vector<2x32xf32>
    %cst_135 = arith.constant 1.000000e+00 : f32
    %292 = vector.broadcast %cst_135 : f32 to vector<2x32xf32>
    %293 = arith.addf %292, %291 : vector<2x32xf32>
    %294 = arith.divf %292, %293 : vector<2x32xf32>
    %295 = vector.extract_strided_slice %282 {offsets = [0, 64], sizes = [2, 32], strides = [1, 1]} : vector<2x128xf32> to vector<2x32xf32>
    %296 = math.tanh %295 : vector<2x32xf32>
    %297 = vector.extract_strided_slice %282 {offsets = [0, 96], sizes = [2, 32], strides = [1, 1]} : vector<2x128xf32> to vector<2x32xf32>
    %298 = arith.negf %297 : vector<2x32xf32>
    %299 = math.exp %298 : vector<2x32xf32>
    %cst_136 = arith.constant 1.000000e+00 : f32
    %300 = vector.broadcast %cst_136 : f32 to vector<2x32xf32>
    %301 = arith.addf %300, %299 : vector<2x32xf32>
    %302 = arith.divf %300, %301 : vector<2x32xf32>
    %c0_137 = arith.constant 0 : index
    %c0_138 = arith.constant 0 : index
    %303 = vector.load %arg12[%c0_137, %c0_138] : memref<2x32xf32, #tpu.memory_space<vmem>>, vector<2x32xf32>
    %304 = arith.mulf %294, %303 : vector<2x32xf32>
    %305 = arith.mulf %288, %296 : vector<2x32xf32>
    %306 = arith.addf %304, %305 : vector<2x32xf32>
    %307 = math.tanh %306 : vector<2x32xf32>
    %308 = arith.mulf %302, %307 : vector<2x32xf32>
    %c0_139 = arith.constant 0 : index
    %c0_140 = arith.constant 0 : index
    %309 = vector.load %arg12[%c0_139, %c0_140] : memref<2x32xf32, #tpu.memory_space<vmem>>, vector<2x32xf32>
    tpu.vector_store %arg12[%c0_139, %c0_140], %306 {strides = array<i32>} : memref<2x32xf32, #tpu.memory_space<vmem>>, vector<2x32xf32>,
    %c0_141 = arith.constant 0 : index
    %c0_142 = arith.constant 0 : index
    %310 = vector.load %arg11[%c0_141, %c0_142] : memref<2x32xf32, #tpu.memory_space<vmem>>, vector<2x32xf32>
    tpu.vector_store %arg11[%c0_141, %c0_142], %308 {strides = array<i32>} : memref<2x32xf32, #tpu.memory_space<vmem>>, vector<2x32xf32>,
    %c0_143 = arith.constant 0 : index
    %311 = arith.index_cast %276 : i32 to index
    %c0_144 = arith.constant 0 : index
    %c0_145 = arith.constant 0 : index
    %312 = vector.load %arg8[%c0_143, %311, %c0_144, %c0_145] : memref<1x8x2x32xf32, #tpu.memory_space<vmem>>, vector<1x1x2x32xf32>
    %313 = vector.shape_cast %312 : vector<1x1x2x32xf32> to vector<2x32xf32>
    %314 = vector.shape_cast %308 : vector<2x32xf32> to vector<1x1x2x32xf32>
    tpu.vector_store %arg8[%c0_143, %311, %c0_144, %c0_145], %314 {strides = array<i32>} : memref<1x8x2x32xf32, #tpu.memory_space<vmem>>, vector<1x1x2x32xf32>,
    %c7_i32_146 = arith.constant 7 : i32
    %c1_i32_147 = arith.constant 1 : i32
    %315 = arith.subi %c1_i32_147, %arg0 : i32
    %316 = arith.muli %315, %c7_i32_146 : i32
    %c7_i32_148 = arith.constant 7 : i32
    %317 = arith.subi %c7_i32_148, %c7_i32_146 : i32
    %318 = arith.muli %arg0, %317 : i32
    %319 = arith.addi %316, %318 : i32
    %c2_i32_149 = arith.constant 2 : i32
    %320 = arith.muli %319, %c2_i32_149 : i32
    %321 = arith.index_cast %320 : i32 to index
    %c0_150 = arith.constant 0 : index
    %322 = vector.load %arg13[%321, %c0_150] : memref<16x128xf32, #tpu.memory_space<vmem>>, vector<2x128xf32>
    %c0_151 = arith.constant 0 : index
    %c0_152 = arith.constant 0 : index
    %323 = vector.load %arg11[%c0_151, %c0_152] : memref<2x32xf32, #tpu.memory_space<vmem>>, vector<2x32xf32>
    %cst_153 = arith.constant dense<0.000000e+00> : vector<2x128xf32>
    %324 = tpu.matmul %323, %13, %cst_153 {dimension_numbers = #tpu.dot_dimension_numbers<[1], [0], [0], [1], [0, 0, 1, 1], [], []>} : vector<2x32xf32>, vector<32x128xf32>, vector<2x128xf32> -> vector<2x128xf32>
    %325 = arith.addf %322, %324 : vector<2x128xf32>
    %326 = vector.extract_strided_slice %325 {offsets = [0, 0], sizes = [2, 32], strides = [1, 1]} : vector<2x128xf32> to vector<2x32xf32>
    %327 = arith.negf %326 : vector<2x32xf32>
    %328 = math.exp %327 : vector<2x32xf32>
    %cst_154 = arith.constant 1.000000e+00 : f32
    %329 = vector.broadcast %cst_154 : f32 to vector<2x32xf32>
    %330 = arith.addf %329, %328 : vector<2x32xf32>
    %331 = arith.divf %329, %330 : vector<2x32xf32>
    %332 = vector.extract_strided_slice %325 {offsets = [0, 32], sizes = [2, 32], strides = [1, 1]} : vector<2x128xf32> to vector<2x32xf32>
    %333 = arith.negf %332 : vector<2x32xf32>
    %334 = math.exp %333 : vector<2x32xf32>
    %cst_155 = arith.constant 1.000000e+00 : f32
    %335 = vector.broadcast %cst_155 : f32 to vector<2x32xf32>
    %336 = arith.addf %335, %334 : vector<2x32xf32>
    %337 = arith.divf %335, %336 : vector<2x32xf32>
    %338 = vector.extract_strided_slice %325 {offsets = [0, 64], sizes = [2, 32], strides = [1, 1]} : vector<2x128xf32> to vector<2x32xf32>
    %339 = math.tanh %338 : vector<2x32xf32>
    %340 = vector.extract_strided_slice %325 {offsets = [0, 96], sizes = [2, 32], strides = [1, 1]} : vector<2x128xf32> to vector<2x32xf32>
    %341 = arith.negf %340 : vector<2x32xf32>
    %342 = math.exp %341 : vector<2x32xf32>
    %cst_156 = arith.constant 1.000000e+00 : f32
    %343 = vector.broadcast %cst_156 : f32 to vector<2x32xf32>
    %344 = arith.addf %343, %342 : vector<2x32xf32>
    %345 = arith.divf %343, %344 : vector<2x32xf32>
    %c0_157 = arith.constant 0 : index
    %c0_158 = arith.constant 0 : index
    %346 = vector.load %arg12[%c0_157, %c0_158] : memref<2x32xf32, #tpu.memory_space<vmem>>, vector<2x32xf32>
    %347 = arith.mulf %337, %346 : vector<2x32xf32>
    %348 = arith.mulf %331, %339 : vector<2x32xf32>
    %349 = arith.addf %347, %348 : vector<2x32xf32>
    %350 = math.tanh %349 : vector<2x32xf32>
    %351 = arith.mulf %345, %350 : vector<2x32xf32>
    %c0_159 = arith.constant 0 : index
    %c0_160 = arith.constant 0 : index
    %352 = vector.load %arg12[%c0_159, %c0_160] : memref<2x32xf32, #tpu.memory_space<vmem>>, vector<2x32xf32>
    tpu.vector_store %arg12[%c0_159, %c0_160], %349 {strides = array<i32>} : memref<2x32xf32, #tpu.memory_space<vmem>>, vector<2x32xf32>,
    %c0_161 = arith.constant 0 : index
    %c0_162 = arith.constant 0 : index
    %353 = vector.load %arg11[%c0_161, %c0_162] : memref<2x32xf32, #tpu.memory_space<vmem>>, vector<2x32xf32>
    tpu.vector_store %arg11[%c0_161, %c0_162], %351 {strides = array<i32>} : memref<2x32xf32, #tpu.memory_space<vmem>>, vector<2x32xf32>,
    %c0_163 = arith.constant 0 : index
    %354 = arith.index_cast %319 : i32 to index
    %c0_164 = arith.constant 0 : index
    %c0_165 = arith.constant 0 : index
    %355 = vector.load %arg8[%c0_163, %354, %c0_164, %c0_165] : memref<1x8x2x32xf32, #tpu.memory_space<vmem>>, vector<1x1x2x32xf32>
    %356 = vector.shape_cast %355 : vector<1x1x2x32xf32> to vector<2x32xf32>
    %357 = vector.shape_cast %351 : vector<2x32xf32> to vector<1x1x2x32xf32>
    tpu.vector_store %arg8[%c0_163, %354, %c0_164, %c0_165], %357 {strides = array<i32>} : memref<1x8x2x32xf32, #tpu.memory_space<vmem>>, vector<1x1x2x32xf32>,
    %c8_i32 = arith.constant 8 : i32
    %c0_i32_166 = arith.constant 0 : i32
    %358 = arith.cmpi eq, %arg1, %c0_i32_166 : i32
    %359 = arith.extui %358 : i1 to i32
    %c0_i32_167 = arith.constant 0 : i32
    %360 = arith.cmpi ne, %359, %c0_i32_167 : i32
    scf.if %360 {
      %c0_168 = arith.constant 0 : index
      %c0_169 = arith.constant 0 : index
      %361 = vector.load %arg11[%c0_168, %c0_169] : memref<2x32xf32, #tpu.memory_space<vmem>>, vector<2x32xf32>
      %c0_170 = arith.constant 0 : index
      %c0_171 = arith.constant 0 : index
      %c0_172 = arith.constant 0 : index
      %362 = vector.load %arg9[%c0_170, %c0_171, %c0_172] : memref<1x2x32xf32, #tpu.memory_space<vmem>>, vector<1x2x32xf32>
      %363 = vector.shape_cast %362 : vector<1x2x32xf32> to vector<2x32xf32>
      %364 = vector.shape_cast %361 : vector<2x32xf32> to vector<1x2x32xf32>
      tpu.vector_store %arg9[%c0_170, %c0_171, %c0_172], %364 {strides = array<i32>} : memref<1x2x32xf32, #tpu.memory_space<vmem>>, vector<1x2x32xf32>,
      %c0_173 = arith.constant 0 : index
      %c0_174 = arith.constant 0 : index
      %365 = vector.load %arg12[%c0_173, %c0_174] : memref<2x32xf32, #tpu.memory_space<vmem>>, vector<2x32xf32>
      %c0_175 = arith.constant 0 : index
      %c0_176 = arith.constant 0 : index
      %c0_177 = arith.constant 0 : index
      %366 = vector.load %arg10[%c0_175, %c0_176, %c0_177] : memref<1x2x32xf32, #tpu.memory_space<vmem>>, vector<1x2x32xf32>
      %367 = vector.shape_cast %366 : vector<1x2x32xf32> to vector<2x32xf32>
      %368 = vector.shape_cast %365 : vector<2x32xf32> to vector<1x2x32xf32>
      tpu.vector_store %arg10[%c0_175, %c0_176, %c0_177], %368 {strides = array<i32>} : memref<1x2x32xf32, #tpu.memory_space<vmem>>, vector<1x2x32xf32>,
    } else {
    }
    return
  }
  func.func @transform_0(%arg0: i32, %arg1: i32) -> (i32, i32) {
    %c1_i32 = arith.constant 1 : i32
    %0 = arith.subi %c1_i32, %arg0 : i32
    %1 = arith.muli %0, %arg1 : i32
    %c0_i32 = arith.constant 0 : i32
    %2 = arith.subi %c0_i32, %arg1 : i32
    %3 = arith.muli %arg0, %2 : i32
    %4 = arith.addi %1, %3 : i32
    %c0_i32_0 = arith.constant 0 : i32
    %c0_i32_1 = arith.constant 0 : i32
    return %4, %c0_i32_0 : i32, i32
  }
  func.func @transform_1(%arg0: i32, %arg1: i32) -> (i32, i32, i32) {
    %c0_i32 = arith.constant 0 : i32
    %c0_i32_0 = arith.constant 0 : i32
    %c0_i32_1 = arith.constant 0 : i32
    return %arg0, %c0_i32, %c0_i32_0 : i32, i32, i32
  }
  func.func @transform_2(%arg0: i32, %arg1: i32) -> (i32, i32, i32) {
    %c0_i32 = arith.constant 0 : i32
    %c0_i32_0 = arith.constant 0 : i32
    %c0_i32_1 = arith.constant 0 : i32
    return %arg0, %c0_i32, %c0_i32_0 : i32, i32, i32
  }
  func.func @transform_3(%arg0: i32, %arg1: i32) -> (i32, i32, i32) {
    %c0_i32 = arith.constant 0 : i32
    %c0_i32_0 = arith.constant 0 : i32
    %c0_i32_1 = arith.constant 0 : i32
    return %arg0, %c0_i32, %c0_i32_0 : i32, i32, i32
  }
  func.func @transform_4(%arg0: i32, %arg1: i32) -> (i32, i32, i32) {
    %c0_i32 = arith.constant 0 : i32
    %c0_i32_0 = arith.constant 0 : i32
    %c0_i32_1 = arith.constant 0 : i32
    return %arg0, %c0_i32, %c0_i32_0 : i32, i32, i32
  }
  func.func @transform_5(%arg0: i32, %arg1: i32) -> (i32, i32, i32) {
    %c0_i32 = arith.constant 0 : i32
    %c0_i32_0 = arith.constant 0 : i32
    %c0_i32_1 = arith.constant 0 : i32
    return %arg0, %c0_i32, %c0_i32_0 : i32, i32, i32
  }
  func.func @transform_6(%arg0: i32, %arg1: i32) -> (i32, i32, i32, i32) {
    %c1_i32 = arith.constant 1 : i32
    %0 = arith.subi %c1_i32, %arg0 : i32
    %1 = arith.muli %0, %arg1 : i32
    %c0_i32 = arith.constant 0 : i32
    %2 = arith.subi %c0_i32, %arg1 : i32
    %3 = arith.muli %arg0, %2 : i32
    %4 = arith.addi %1, %3 : i32
    %c0_i32_0 = arith.constant 0 : i32
    %c0_i32_1 = arith.constant 0 : i32
    %c0_i32_2 = arith.constant 0 : i32
    return %arg0, %4, %c0_i32_0, %c0_i32_1 : i32, i32, i32, i32
  }
  func.func @transform_7(%arg0: i32, %arg1: i32) -> (i32, i32, i32) {
    %c0_i32 = arith.constant 0 : i32
    %c0_i32_0 = arith.constant 0 : i32
    %c0_i32_1 = arith.constant 0 : i32
    return %arg0, %c0_i32, %c0_i32_0 : i32, i32, i32
  }
  func.func @transform_8(%arg0: i32, %arg1: i32) -> (i32, i32, i32) {
    %c0_i32 = arith.constant 0 : i32
    %c0_i32_0 = arith.constant 0 : i32
    %c0_i32_1 = arith.constant 0 : i32
    return %arg0, %c0_i32, %c0_i32_0 : i32, i32, i32
  }
}

</mosaic_0001>

<llo_original>
// kernel: encoder_lstm_forward.2
$region0: #{encoder_lstm_forward.2}
  #allocation0 [shape = 'u32[]', space=smem, size = 0x4, offset = 0x4, fixed_abs, tag = 'smem constant byte address 0x4 - core index']
  #allocation1 [shape = 'u32[144,128]{1,0:T(1,128)}', space=vmem, size = 0x12000, scoped, tag = 'internal scratch']
  #allocation2 [shape = 'f32[2,32]{1,0:T(2,128)}', space=vmem, size = 0x400, scoped, tag = 'scratch operand']
  #allocation3 [shape = 'f32[2,32]{1,0:T(2,128)}', space=vmem, size = 0x400, scoped, tag = 'scratch operand']
  #allocation4 [shape = 'f32[16,128]{1,0:T(8,128)}', space=vmem, size = 0x2000, scoped, tag = 'scratch operand']
  %s0 = inlined_call_operand.vmem [shape: f32[16,64], index: 0, kind: input, shape index: {}]
  %s1 = inlined_call_operand.vmem [shape: f32[2,64,128], index: 1, kind: input, shape index: {}]
  %s2 = inlined_call_operand.vmem [shape: f32[2,32,128], index: 2, kind: input, shape index: {}]
  %s3 = inlined_call_operand.vmem [shape: f32[2,1,128], index: 3, kind: input, shape index: {}]
  %s4 = inlined_call_operand.vmem [shape: f32[2,2,32], index: 4, kind: input, shape index: {}]
  %s5 = inlined_call_operand.vmem [shape: f32[2,2,32], index: 5, kind: input, shape index: {}]
  %s6 = inlined_call_operand.vmem [shape: f32[2,8,2,32], index: 6, kind: output, shape index: {0}]
  %s7 = inlined_call_operand.vmem [shape: f32[2,2,32], index: 7, kind: output, shape index: {1}]
  %s8 = inlined_call_operand.vmem [shape: f32[2,2,32], index: 8, kind: output, shape index: {2}]
  %9 = xla_tuple %s6, %s7, %s8
  %s10 = sld [smem:[#allocation0]]
  $region81: #{encoder_lstm_forward.2} parent=0
    _
  %s12 = ssub.s32 1, %s10
  %s13 = scalar_select 0, %s12, %s10
  loop: start=0, step=1, limit=4
  $region2: #{encoder_lstm_forward.2} parent=0 // loop_pre_header
    _
  $region3: #{encoder_lstm_forward.2} parent=0 // loop_header
    %s15 = sphi 0, %s19
    %p16 = scmp.ge.s32.totalorder %s15, 4
    %s22 = sphi 0, %s34
    %s23 = sphi 0, %s30
    %s24 = sphi 0, %s22
    %s25 = sphi 0, %s23
    %s26 = sphi 0, %s24
    %s27 = sphi 0, %s25
    %s47 = sphi 0, %s49
    %s50 = sphi 0, %s47
    %s51 = sphi 0, %s50
    %s67 = sphi 0, %s51
    %s73 = sphi 0, %s75
    %s76 = sphi 0, %s73
    %s77 = sphi 0, %s76
    %s93 = sphi 0, %s77
    %s99 = sphi 0, %s101
    %s102 = sphi 0, %s99
    %s103 = sphi 0, %s102
    %s119 = sphi 0, %s103
    %s125 = sphi 0, %s127
    %s128 = sphi 0, %s125
    %s129 = sphi 0, %s128
    %s145 = sphi 0, %s129
    %s151 = sphi 0, %s153
    %s154 = sphi 0, %s151
    %s155 = sphi 0, %s154
    %s171 = sphi 0, %s155
    %s177 = sphi 0, %s179
    %s180 = sphi 0, %s177
    %s181 = sphi 0, %s180
    %s197 = sphi 0, %s181
    %s215 = sphi 0, %s217
    %s218 = sphi 0, %s215
    %s219 = sphi 0, %s218
    %s235 = sphi 0, %s219
    %s241 = sphi 0, %s243
    %s244 = sphi 0, %s241
    %s245 = sphi 0, %s244
    %s261 = sphi 0, %s245
    %s267 = sphi 0, %s269
    %s270 = sphi 0, %s267
    %s271 = sphi 0, %s270
    %s287 = sphi 0, %s271
  $region4: #{encoder_lstm_forward.2} parent=0 // loop_header_branch
    %18 = sbr.rel (%p16) target = $region8
  $region5: #{encoder_lstm_forward.2} parent=0 // loop_body
    %s20 = ssub.s32 %s15, 1
    %s21 = ssub.s32 %s15, 2
    %s28 = sadd.s32 1, %s23
    %p29 = scmp.ge.s32.totalorder %s28, 1
    %s30 = scalar_select %p29, 0, %s28
    %s31 = sadd.s32 1, %s22
    %s32 = scalar_select %p29, %s31, %s22
    %p33 = scmp.ge.s32.totalorder %s32, 2
    %s34 = scalar_select %p33, 0, %s32
    %s35 = ssub.s32 1, %s22
    %s36 = smul.u32 %s35, %s23
    %s37 = ssub.s32 0, %s23
    %s38 = smul.u32 %s22, %s37
    %s39 = sadd.s32 %s36, %s38
    %s40 = ssub.s32 1, %s34
    %s41 = smul.u32 %s40, %s30
    %s42 = ssub.s32 0, %s30
    %s43 = smul.u32 %s34, %s42
    %s44 = sadd.s32 %s41, %s43
    %s45 = ssub.s32 %s39, %s44
    %p46 = scmp.eq.s32.totalorder %s45, 0
    %s48 = sadd.s32 %s47, 1
    %s49 = scalar_select %p46, %s47, %s48
    %p52 = pneg %p46
    %p53 = scmp.eq.s32.totalorder %s15, 1
    %p54 = por %p52, %p53
    %p55 = scmp.ne.s32.totalorder %s47, %s50
    %p56 = scmp.eq.s32.totalorder %s15, 0
    %p57 = por %p55, %p56
    %p58 = scmp.ne.s32.totalorder %s47, %s50
    %p59 = scmp.eq.s32.totalorder %s20, 1
    %p60 = por %p58, %p59
    %p61 = scmp.ne.s32.totalorder %s50, %s51
    %p62 = scmp.eq.s32.totalorder %s20, 0
    %p63 = por %p61, %p62
    %p64 = scmp.ne.s32.totalorder %s50, %s51
    %p65 = scmp.eq.s32.totalorder %s21, 1
    %p66 = por %p64, %p65
    %p68 = scmp.ne.s32.totalorder %s51, %s67
    %p69 = scmp.eq.s32.totalorder %s21, 0
    %p70 = por %p68, %p69
    %s71 = ssub.s32 %s22, %s34
    %p72 = scmp.eq.s32.totalorder %s71, 0
    %s74 = sadd.s32 %s73, 1
    %s75 = scalar_select %p72, %s73, %s74
    %p78 = pneg %p72
    %p79 = scmp.eq.s32.totalorder %s15, 1
    %p80 = por %p78, %p79
    %p81 = scmp.ne.s32.totalorder %s73, %s76
    %p82 = scmp.eq.s32.totalorder %s15, 0
    %p83 = por %p81, %p82
    %p84 = scmp.ne.s32.totalorder %s73, %s76
    %p85 = scmp.eq.s32.totalorder %s20, 1
    %p86 = por %p84, %p85
    %p87 = scmp.ne.s32.totalorder %s76, %s77
    %p88 = scmp.eq.s32.totalorder %s20, 0
    %p89 = por %p87, %p88
    %p90 = scmp.ne.s32.totalorder %s76, %s77
    %p91 = scmp.eq.s32.totalorder %s21, 1
    %p92 = por %p90, %p91
    %p94 = scmp.ne.s32.totalorder %s77, %s93
    %p95 = scmp.eq.s32.totalorder %s21, 0
    %p96 = por %p94, %p95
    %s97 = ssub.s32 %s22, %s34
    %p98 = scmp.eq.s32.totalorder %s97, 0
    %s100 = sadd.s32 %s99, 1
    %s101 = scalar_select %p98, %s99, %s100
    %p104 = pneg %p98
    %p105 = scmp.eq.s32.totalorder %s15, 1
    %p106 = por %p104, %p105
    %p107 = scmp.ne.s32.totalorder %s99, %s102
    %p108 = scmp.eq.s32.totalorder %s15, 0
    %p109 = por %p107, %p108
    %p110 = scmp.ne.s32.totalorder %s99, %s102
    %p111 = scmp.eq.s32.totalorder %s20, 1
    %p112 = por %p110, %p111
    %p113 = scmp.ne.s32.totalorder %s102, %s103
    %p114 = scmp.eq.s32.totalorder %s20, 0
    %p115 = por %p113, %p114
    %p116 = scmp.ne.s32.totalorder %s102, %s103
    %p117 = scmp.eq.s32.totalorder %s21, 1
    %p118 = por %p116, %p117
    %p120 = scmp.ne.s32.totalorder %s103, %s119
    %p121 = scmp.eq.s32.totalorder %s21, 0
    %p122 = por %p120, %p121
    %s123 = ssub.s32 %s22, %s34
    %p124 = scmp.eq.s32.totalorder %s123, 0
    %s126 = sadd.s32 %s125, 1
    %s127 = scalar_select %p124, %s125, %s126
    %p130 = pneg %p124
    %p131 = scmp.eq.s32.totalorder %s15, 1
    %p132 = por %p130, %p131
    %p133 = scmp.ne.s32.totalorder %s125, %s128
    %p134 = scmp.eq.s32.totalorder %s15, 0
    %p135 = por %p133, %p134
    %p136 = scmp.ne.s32.totalorder %s125, %s128
    %p137 = scmp.eq.s32.totalorder %s20, 1
    %p138 = por %p136, %p137
    %p139 = scmp.ne.s32.totalorder %s128, %s129
    %p140 = scmp.eq.s32.totalorder %s20, 0
    %p141 = por %p139, %p140
    %p142 = scmp.ne.s32.totalorder %s128, %s129
    %p143 = scmp.eq.s32.totalorder %s21, 1
    %p144 = por %p142, %p143
    %p146 = scmp.ne.s32.totalorder %s129, %s145
    %p147 = scmp.eq.s32.totalorder %s21, 0
    %p148 = por %p146, %p147
    %s149 = ssub.s32 %s22, %s34
    %p150 = scmp.eq.s32.totalorder %s149, 0
    %s152 = sadd.s32 %s151, 1
    %s153 = scalar_select %p150, %s151, %s152
    %p156 = pneg %p150
    %p157 = scmp.eq.s32.totalorder %s15, 1
    %p158 = por %p156, %p157
    %p159 = scmp.ne.s32.totalorder %s151, %s154
    %p160 = scmp.eq.s32.totalorder %s15, 0
    %p161 = por %p159, %p160
    %p162 = scmp.ne.s32.totalorder %s151, %s154
    %p163 = scmp.eq.s32.totalorder %s20, 1
    %p164 = por %p162, %p163
    %p165 = scmp.ne.s32.totalorder %s154, %s155
    %p166 = scmp.eq.s32.totalorder %s20, 0
    %p167 = por %p165, %p166
    %p168 = scmp.ne.s32.totalorder %s154, %s155
    %p169 = scmp.eq.s32.totalorder %s21, 1
    %p170 = por %p168, %p169
    %p172 = scmp.ne.s32.totalorder %s155, %s171
    %p173 = scmp.eq.s32.totalorder %s21, 0
    %p174 = por %p172, %p173
    %s175 = ssub.s32 %s22, %s34
    %p176 = scmp.eq.s32.totalorder %s175, 0
    %s178 = sadd.s32 %s177, 1
    %s179 = scalar_select %p176, %s177, %s178
    %p182 = pneg %p176
    %p183 = scmp.eq.s32.totalorder %s15, 1
    %p184 = por %p182, %p183
    %p185 = scmp.ne.s32.totalorder %s177, %s180
    %p186 = scmp.eq.s32.totalorder %s15, 0
    %p187 = por %p185, %p186
    %p188 = scmp.ne.s32.totalorder %s177, %s180
    %p189 = scmp.eq.s32.totalorder %s20, 1
    %p190 = por %p188, %p189
    %p191 = scmp.ne.s32.totalorder %s180, %s181
    %p192 = scmp.eq.s32.totalorder %s20, 0
    %p193 = por %p191, %p192
    %p194 = scmp.ne.s32.totalorder %s180, %s181
    %p195 = scmp.eq.s32.totalorder %s21, 1
    %p196 = por %p194, %p195
    %p198 = scmp.ne.s32.totalorder %s181, %s197
    %p199 = scmp.eq.s32.totalorder %s21, 0
    %p200 = por %p198, %p199
    %s201 = ssub.s32 1, %s22
    %s202 = smul.u32 %s201, %s23
    %s203 = ssub.s32 0, %s23
    %s204 = smul.u32 %s22, %s203
    %s205 = sadd.s32 %s202, %s204
    %s206 = ssub.s32 1, %s34
    %s207 = smul.u32 %s206, %s30
    %s208 = ssub.s32 0, %s30
    %s209 = smul.u32 %s34, %s208
    %s210 = sadd.s32 %s207, %s209
    %s211 = ssub.s32 %s22, %s34
    %s212 = ssub.s32 %s205, %s210
    %s213 = sor.u32 %s211, %s212
    %p214 = scmp.eq.s32.totalorder %s213, 0
    %s216 = sadd.s32 %s215, 1
    %s217 = scalar_select %p214, %s215, %s216
    %p220 = pneg %p214
    %p221 = scmp.eq.s32.totalorder %s15, 1
    %p222 = por %p220, %p221
    %p223 = scmp.ne.s32.totalorder %s215, %s218
    %p224 = scmp.eq.s32.totalorder %s15, 0
    %p225 = por %p223, %p224
    %p226 = scmp.ne.s32.totalorder %s215, %s218
    %p227 = scmp.eq.s32.totalorder %s20, 1
    %p228 = por %p226, %p227
    %p229 = scmp.ne.s32.totalorder %s218, %s219
    %p230 = scmp.eq.s32.totalorder %s20, 0
    %p231 = por %p229, %p230
    %p232 = scmp.ne.s32.totalorder %s218, %s219
    %p233 = scmp.eq.s32.totalorder %s21, 1
    %p234 = por %p232, %p233
    %p236 = scmp.ne.s32.totalorder %s219, %s235
    %p237 = scmp.eq.s32.totalorder %s21, 0
    %p238 = por %p236, %p237
    %s239 = ssub.s32 %s22, %s34
    %p240 = scmp.eq.s32.totalorder %s239, 0
    %s242 = sadd.s32 %s241, 1
    %s243 = scalar_select %p240, %s241, %s242
    %p246 = pneg %p240
    %p247 = scmp.eq.s32.totalorder %s15, 1
    %p248 = por %p246, %p247
    %p249 = scmp.ne.s32.totalorder %s241, %s244
    %p250 = scmp.eq.s32.totalorder %s15, 0
    %p251 = por %p249, %p250
    %p252 = scmp.ne.s32.totalorder %s241, %s244
    %p253 = scmp.eq.s32.totalorder %s20, 1
    %p254 = por %p252, %p253
    %p255 = scmp.ne.s32.totalorder %s244, %s245
    %p256 = scmp.eq.s32.totalorder %s20, 0
    %p257 = por %p255, %p256
    %p258 = scmp.ne.s32.totalorder %s244, %s245
    %p259 = scmp.eq.s32.totalorder %s21, 1
    %p260 = por %p258, %p259
    %p262 = scmp.ne.s32.totalorder %s245, %s261
    %p263 = scmp.eq.s32.totalorder %s21, 0
    %p264 = por %p262, %p263
    %s265 = ssub.s32 %s22, %s34
    %p266 = scmp.eq.s32.totalorder %s265, 0
    %s268 = sadd.s32 %s267, 1
    %s269 = scalar_select %p266, %s267, %s268
    %p272 = pneg %p266
    %p273 = scmp.eq.s32.totalorder %s15, 1
    %p274 = por %p272, %p273
    %p275 = scmp.ne.s32.totalorder %s267, %s270
    %p276 = scmp.eq.s32.totalorder %s15, 0
    %p277 = por %p275, %p276
    %p278 = scmp.ne.s32.totalorder %s267, %s270
    %p279 = scmp.eq.s32.totalorder %s20, 1
    %p280 = por %p278, %p279
    %p281 = scmp.ne.s32.totalorder %s270, %s271
    %p282 = scmp.eq.s32.totalorder %s20, 0
    %p283 = por %p281, %p282
    %p284 = scmp.ne.s32.totalorder %s270, %s271
    %p285 = scmp.eq.s32.totalorder %s21, 1
    %p286 = por %p284, %p285
    %p288 = scmp.ne.s32.totalorder %s271, %s287
    %p289 = scmp.eq.s32.totalorder %s21, 0
    %p290 = por %p288, %p289
    %p291 = scmp.le.s32.totalorder 1, %s15
    %p292 = scmp.lt.s32.totalorder %s15, 3
    %p293 = pnand %p291, %p292
    %p294 = pneg %p293
    // Predicated region
    $region9: #{encoder_lstm_forward.2} parent=5 // pred_check
      _
    $region10: #{encoder_lstm_forward.2} parent=5 // pred_check_branch
      %296 = sbr.rel (%p293) target = $region12
    $region11: #{encoder_lstm_forward.2} parent=5 // pred_region
      %s297 = ssub.s32 %s15, 1
    $region12: #{encoder_lstm_forward.2} parent=5 // pred_fallthru
      _
    %p298 = scmp.lt.s32.totalorder %s15, 2
    // Predicated region
    $region13: #{encoder_lstm_forward.2} parent=5 // pred_check
      %p299 = pneg %p298
    $region14: #{encoder_lstm_forward.2} parent=5 // pred_check_branch
      %301 = sbr.rel (%p299) target = $region16
    $region15: #{encoder_lstm_forward.2} parent=5 // pred_region
      // Predicated region
      $region17: #{encoder_lstm_forward.2} parent=15 // pred_check
        %p302 = pneg %p57
      $region18: #{encoder_lstm_forward.2} parent=15 // pred_check_branch
        %304 = sbr.rel (%p302) target = $region20
      $region19: #{encoder_lstm_forward.2} parent=15 // pred_region
        %s305 = ssub.s32 1, %s22
        %s306 = smul.u32 %s305, %s23
        %s307 = ssub.s32 0, %s23
        %s308 = smul.u32 %s22, %s307
        %s309 = sadd.s32 %s306, %s308
        %s310 = smul.u32 2, %s309
        %p311 = scmp.lt.s32.totalorder %s310, 1
        %s312 = scalar_select %p311, %s310, 1
        %s313 = smul.addr %s312, 8
        %s314 = scalar_lea.vmem %s0, %s313
        %s315 = ssub.s32 1, %s22
        %s316 = smul.u32 %s315, %s23
        %s317 = ssub.s32 0, %s23
        %s318 = smul.u32 %s22, %s317
        %s319 = sadd.s32 %s316, %s318
        %s320 = smul.u32 2, %s319
      $region20: #{encoder_lstm_forward.2} parent=15 // pred_fallthru
        _
      // Predicated region
      $region21: #{encoder_lstm_forward.2} parent=15 // pred_check
        %p321 = pneg %p83
      $region22: #{encoder_lstm_forward.2} parent=15 // pred_check_branch
        %323 = sbr.rel (%p321) target = $region24
      $region23: #{encoder_lstm_forward.2} parent=15 // pred_region
        %p324 = scmp.lt.s32.totalorder %s22, 1
        %s325 = scalar_select %p324, %s22, 1
        %s326 = smul.addr %s325, 8
        %s327 = smul.addr %s326, 8
        %s328 = scalar_lea.vmem %s1, %s327
      $region24: #{encoder_lstm_forward.2} parent=15 // pred_fallthru
        _
      // Predicated region
      $region25: #{encoder_lstm_forward.2} parent=15 // pred_check
        %p329 = pneg %p109
      $region26: #{encoder_lstm_forward.2} parent=15 // pred_check_branch
        %331 = sbr.rel (%p329) target = $region28
      $region27: #{encoder_lstm_forward.2} parent=15 // pred_region
        %p332 = scmp.lt.s32.totalorder %s22, 1
        %s333 = scalar_select %p332, %s22, 1
        %s334 = smul.addr %s333, 4
        %s335 = smul.addr %s334, 8
        %s336 = scalar_lea.vmem %s2, %s335
      $region28: #{encoder_lstm_forward.2} parent=15 // pred_fallthru
        _
      // Predicated region
      $region29: #{encoder_lstm_forward.2} parent=15 // pred_check
        %p337 = pneg %p135
      $region30: #{encoder_lstm_forward.2} parent=15 // pred_check_branch
        %339 = sbr.rel (%p337) target = $region32
      $region31: #{encoder_lstm_forward.2} parent=15 // pred_region
        %p340 = scmp.lt.s32.totalorder %s22, 1
        %s341 = scalar_select %p340, %s22, 1
        %s342 = scalar_lea.vmem %s3, %s341
      $region32: #{encoder_lstm_forward.2} parent=15 // pred_fallthru
        _
      // Predicated region
      $region33: #{encoder_lstm_forward.2} parent=15 // pred_check
        %p343 = pneg %p161
      $region34: #{encoder_lstm_forward.2} parent=15 // pred_check_branch
        %345 = sbr.rel (%p343) target = $region36
      $region35: #{encoder_lstm_forward.2} parent=15 // pred_region
        %p346 = scmp.lt.s32.totalorder %s22, 1
        %s347 = scalar_select %p346, %s22, 1
        %s348 = smul.addr %s347, 2
        %s349 = scalar_lea.vmem %s4, %s348
      $region36: #{encoder_lstm_forward.2} parent=15 // pred_fallthru
        _
      // Predicated region
      $region37: #{encoder_lstm_forward.2} parent=15 // pred_check
        %p350 = pneg %p187
      $region38: #{encoder_lstm_forward.2} parent=15 // pred_check_branch
        %352 = sbr.rel (%p350) target = $region40
      $region39: #{encoder_lstm_forward.2} parent=15 // pred_region
        %p353 = scmp.lt.s32.totalorder %s22, 1
        %s354 = scalar_select %p353, %s22, 1
        %s355 = smul.addr %s354, 2
        %s356 = scalar_lea.vmem %s5, %s355
      $region40: #{encoder_lstm_forward.2} parent=15 // pred_fallthru
        _
    $region16: #{encoder_lstm_forward.2} parent=5 // pred_fallthru
      _
    %p357 = scmp.le.s32.totalorder 1, %s15
    %p358 = scmp.lt.s32.totalorder %s15, 3
    %p359 = pnand %p357, %p358
    %p360 = pneg %p359
    // Predicated region
    $region41: #{encoder_lstm_forward.2} parent=5 // pred_check
      _
    $region42: #{encoder_lstm_forward.2} parent=5 // pred_check_branch
      %362 = sbr.rel (%p359) target = $region44
    $region43: #{encoder_lstm_forward.2} parent=5 // pred_region
      %s363 = ssub.s32 %s15, 1
      %s364 = ssub.s32 1, %s24
      %s365 = smul.u32 %s364, %s25
      %s366 = ssub.s32 0, %s25
      %s367 = smul.u32 %s24, %s366
      %s368 = sadd.s32 %s365, %s367
      %s369 = smul.u32 2, %s368
      %p370 = scmp.lt.s32.totalorder %s369, 1
      %s371 = scalar_select %p370, %s369, 1
      %s372 = smul.addr %s371, 8
      %s373 = scalar_lea.vmem %s0, %s372
      %p374 = pneg %p63
      %p375 = pneg %p60
      %p376 = scmp.lt.s32.totalorder %s24, 1
      %s377 = scalar_select %p376, %s24, 1
      %s378 = smul.addr %s377, 8
      %s379 = smul.addr %s378, 8
      %s380 = scalar_lea.vmem %s1, %s379
      %p381 = pneg %p89
      %p382 = pneg %p86
      %p383 = scmp.lt.s32.totalorder %s24, 1
      %s384 = scalar_select %p383, %s24, 1
      %s385 = smul.addr %s384, 4
      %s386 = smul.addr %s385, 8
      %s387 = scalar_lea.vmem %s2, %s386
      %p388 = pneg %p115
      %p389 = pneg %p112
      %p390 = scmp.lt.s32.totalorder %s24, 1
      %s391 = scalar_select %p390, %s24, 1
      %s392 = scalar_lea.vmem %s3, %s391
      %p393 = pneg %p141
      %p394 = pneg %p138
      %p395 = scmp.lt.s32.totalorder %s24, 1
      %s396 = scalar_select %p395, %s24, 1
      %s397 = smul.addr %s396, 2
      %s398 = scalar_lea.vmem %s4, %s397
      %p399 = pneg %p167
      %p400 = pneg %p164
      %p401 = scmp.lt.s32.totalorder %s24, 1
      %s402 = scalar_select %p401, %s24, 1
      %s403 = smul.addr %s402, 2
      %s404 = scalar_lea.vmem %s5, %s403
      %p405 = pneg %p193
      %p406 = pneg %p190
      %p407 = pneg %p231
      %p408 = pneg %p228
      %s409 = ssub.s32 1, %s24
      %s410 = smul.u32 %s409, %s25
      %s411 = ssub.s32 0, %s25
      %s412 = smul.u32 %s24, %s411
      %s413 = sadd.s32 %s410, %s412
      %s414 = smul.u32 8, %s413
      %p415 = scmp.lt.s32.totalorder %s24, 1
      %s416 = scalar_select %p415, %s24, 1
      %p417 = scmp.lt.s32.totalorder %s414, 7
      %s418 = scalar_select %p417, %s414, 7
      %s419 = smul.addr %s416, 8
      %s420 = sadd.s32 %s418, %s419
      %s421 = smul.addr %s420, 2
      %s422 = scalar_lea.vmem %s6, %s421
      %p423 = pneg %p257
      %p424 = pneg %p254
      %p425 = scmp.lt.s32.totalorder %s24, 1
      %s426 = scalar_select %p425, %s24, 1
      %s427 = smul.addr %s426, 2
      %s428 = scalar_lea.vmem %s7, %s427
      %p429 = pneg %p283
      %p430 = pneg %p280
      %p431 = scmp.lt.s32.totalorder %s24, 1
      %s432 = scalar_select %p431, %s24, 1
      %s433 = smul.addr %s432, 2
      %s434 = scalar_lea.vmem %s8, %s433
      %s435 = ssub.s32 1, %s24
      %s436 = smul.u32 %s435, %s25
      %s437 = ssub.s32 0, %s25
      %s438 = smul.u32 %s24, %s437
      %s439 = sadd.s32 %s436, %s438
      %s440 = smul.u32 2, %s439
      %p441 = scmp.lt.s32.totalorder %s440, 1
      %s442 = scalar_select %p441, %s440, 1
      %s443 = smul.addr %s442, 8
      %s444 = scalar_lea.vmem %s0, %s443
      %s445 = ssub.s32 1, %s24
      %s446 = smul.u32 %s445, %s25
      %s447 = ssub.s32 0, %s25
      %s448 = smul.u32 %s24, %s447
      %s449 = sadd.s32 %s446, %s448
      %s450 = smul.u32 2, %s449
      %p451 = scmp.lt.s32.totalorder %s24, 1
      %s452 = scalar_select %p451, %s24, 1
      %s453 = smul.addr %s452, 8
      %s454 = smul.addr %s453, 8
      %s455 = scalar_lea.vmem %s1, %s454
      %p456 = scmp.lt.s32.totalorder %s24, 1
      %s457 = scalar_select %p456, %s24, 1
      %s458 = smul.addr %s457, 4
      %s459 = smul.addr %s458, 8
      %s460 = scalar_lea.vmem %s2, %s459
      %p461 = scmp.lt.s32.totalorder %s24, 1
      %s462 = scalar_select %p461, %s24, 1
      %s463 = scalar_lea.vmem %s3, %s462
      %p464 = scmp.lt.s32.totalorder %s24, 1
      %s465 = scalar_select %p464, %s24, 1
      %s466 = smul.addr %s465, 2
      %s467 = scalar_lea.vmem %s4, %s466
      %p468 = scmp.lt.s32.totalorder %s24, 1
      %s469 = scalar_select %p468, %s24, 1
      %s470 = smul.addr %s469, 2
      %s471 = scalar_lea.vmem %s5, %s470
      %s472 = ssub.s32 1, %s24
      %s473 = smul.u32 %s472, %s25
      %s474 = ssub.s32 0, %s25
      %s475 = smul.u32 %s24, %s474
      %s476 = sadd.s32 %s473, %s475
      %s477 = smul.u32 8, %s476
      %p478 = scmp.lt.s32.totalorder %s24, 1
      %s479 = scalar_select %p478, %s24, 1
      %p480 = scmp.lt.s32.totalorder %s477, 7
      %s481 = scalar_select %p480, %s477, 7
      %s482 = smul.addr %s479, 8
      %s483 = sadd.s32 %s481, %s482
      %s484 = smul.addr %s483, 2
      %s485 = scalar_lea.vmem %s6, %s484
      %s486 = ssub.s32 1, %s24
      %s487 = smul.u32 %s486, %s25
      %s488 = ssub.s32 0, %s25
      %s489 = smul.u32 %s24, %s488
      %s490 = sadd.s32 %s487, %s489
      %s491 = smul.u32 8, %s490
      %p492 = scmp.lt.s32.totalorder %s24, 1
      %s493 = scalar_select %p492, %s24, 1
      %s494 = smul.addr %s493, 2
      %s495 = scalar_lea.vmem %s7, %s494
      %p496 = scmp.lt.s32.totalorder %s24, 1
      %s497 = scalar_select %p496, %s24, 1
      %s498 = smul.addr %s497, 2
      %s499 = scalar_lea.vmem %s8, %s498
      %p500 = scmp.eq.s32.totalorder %s25, 0
      // Predicated region
      $region45: #{encoder_lstm_forward.2} parent=43 // pred_check
        %p501 = pneg %p500
      $region46: #{encoder_lstm_forward.2} parent=43 // pred_check_branch
        %503 = sbr.rel (%p501) target = $region48
      $region47: #{encoder_lstm_forward.2} parent=43 // pred_region
        %v504 = vld [vmem:[%s467] sm:$0x3]
        %vm505 = vcmask 254976
        %506 = vst.msk [vmem:[#allocation2] sm:$0x3] %vm505, %v504
        %v507 = vld [vmem:[%s471] sm:$0x3]
        %508 = vst.msk [vmem:[#allocation3] sm:$0x3] %vm505, %v507
      $region48: #{encoder_lstm_forward.2} parent=43 // pred_fallthru
        _
      %v509 = vld [vmem:[%s444] sm:$0xff]
      %v510 = vld [vmem:[%s444 + $0x8] sm:$0xff]
      %v511 = vld [vmem:[%s455] sm:$0xff]
      %v512 = vld [vmem:[%s455 + $0x8] sm:$0xff]
      %v513 = vld [vmem:[%s455 + $0x10] sm:$0xff]
      %v514 = vld [vmem:[%s455 + $0x18] sm:$0xff]
      %v515 = vld [vmem:[%s455 + $0x20] sm:$0xff]
      %v516 = vld [vmem:[%s455 + $0x28] sm:$0xff]
      %v517 = vld [vmem:[%s455 + $0x30] sm:$0xff]
      %v518 = vld [vmem:[%s455 + $0x38] sm:$0xff]
      %v519 = vld [vmem:[%s463] sm:$0x1]
      %v521 = vlaneseq
      %v522 = vshrl.u32 %v521, 7
      %v523 = vsub.s32 0, %v522
      %v524 = vrot.slane %v519, %v523
      %vm526 = vcmask 523264
      %v528 = vsel %vm526, %v509, 0
      %v531 = vsel %vm526, %v510, 0
      %533 = vmatprep.subr.mxu0 0.0
      %534 = vmatpush1.msra.mxu0 0.0
      %535 = vmatprep.subr.mxu0 0.0
      %536 = vmatpush1.msra.mxu0 0.0
      %537 = vmatprep.subr.mxu0 0.0
      %538 = vmatpush1.msra.mxu0 0.0
      %539 = vmatprep.subr.mxu0 0.0
      %540 = vmatpush1.msra.mxu0 0.0
      %541 = vmatprep.subr.mxu0 0.0
      %542 = vmatpush1.msra.mxu0 0.0
      %543 = vmatprep.subr.mxu0 0.0
      %544 = vmatpush1.msra.mxu0 0.0
      %545 = vmatprep.subr.mxu0 0.0
      %546 = vmatpush1.msra.mxu0 0.0
      %547 = vmatprep.subr.mxu0 0.0
      %548 = vmatpush1.msra.mxu0 0.0
      %549 = vmatprep.subr.mxu0 0.0
      %550 = vmatpush1.msra.mxu0 %v518
      %551 = vmatprep.subr.mxu0 0.0
      %552 = vmatpush1.msra.mxu0 %v517
      %553 = vmatprep.subr.mxu0 0.0
      %554 = vmatpush1.msra.mxu0 %v516
      %555 = vmatprep.subr.mxu0 0.0
      %556 = vmatpush1.msra.mxu0 %v515
      %557 = vmatprep.subr.mxu0 0.0
      %558 = vmatpush1.msra.mxu0 %v514
      %559 = vmatprep.subr.mxu0 0.0
      %560 = vmatpush1.msra.mxu0 %v513
      %561 = vmatprep.subr.mxu0 0.0
      %562 = vmatpush1.msra.mxu0 %v512
      %563 = vmatprep.subr.mxu0 0.0
      %564 = vmatpush1.msra.mxu0 %v511
      %565 = vmatprep.subr.mxu0 0.0
      %566 = vmatpush2.msra.mxu0 0.0
      %567 = vmatprep.subr.mxu0 0.0
      %568 = vmatpush2.msra.mxu0 0.0
      %569 = vmatprep.subr.mxu0 0.0
      %570 = vmatpush2.msra.mxu0 0.0
      %571 = vmatprep.subr.mxu0 0.0
      %572 = vmatpush2.msra.mxu0 0.0
      %573 = vmatprep.subr.mxu0 0.0
      %574 = vmatpush2.msra.mxu0 0.0
      %575 = vmatprep.subr.mxu0 0.0
      %576 = vmatpush2.msra.mxu0 0.0
      %577 = vmatprep.subr.mxu0 0.0
      %578 = vmatpush2.msra.mxu0 0.0
      %579 = vmatprep.subr.mxu0 0.0
      %580 = vmatpush2.msra.mxu0 0.0
      %581 = vmatprep.subr.mxu0 0.0
      %582 = vmatpush2.msra.mxu0 0.0
      %583 = vmatprep.subr.mxu0 0.0
      %584 = vmatpush2.msra.mxu0 0.0
      %585 = vmatprep.subr.mxu0 0.0
      %586 = vmatpush2.msra.mxu0 0.0
      %587 = vmatprep.subr.mxu0 0.0
      %588 = vmatpush2.msra.mxu0 0.0
      %589 = vmatprep.subr.mxu0 0.0
      %590 = vmatpush2.msra.mxu0 0.0
      %591 = vmatprep.subr.mxu0 0.0
      %592 = vmatpush2.msra.mxu0 0.0
      %593 = vmatprep.subr.mxu0 0.0
      %594 = vmatpush2.msra.mxu0 0.0
      %595 = vmatprep.subr.mxu0 0.0
      %596 = vmatpush2.msra.mxu0 0.0
      %597 = vmatprep.mubr.f32.mxu0 0.0
      %598 = vmatmul.mubr.f32.gmra.mxu0 %v528
      %v599 = vpop.f32.mrf.mxu0
      %v600 = vadd.f32 %v524, %v599
      %v601 = vpop.f32.mrf.mxu0
      %602 = vmatprep.mubr.f32.mxu0 0.0
      %603 = vmatmul.mubr.f32.gmra.mxu0 %v531
      %v604 = vpop.f32.mrf.mxu0
      %v605 = vadd.f32 %v524, %v604
      %v606 = vpop.f32.mrf.mxu0
      %607 = vdwg.mxu0
      %608 = vst [vmem:[#allocation4] sm:$0xff] %v600
      %609 = vst [vmem:[#allocation4 + $0x8] sm:$0xff] %v605
      %v610 = vld [vmem:[%s460] sm:$0xff]
      %v611 = vld [vmem:[%s460 + $0x8] sm:$0xff]
      %v612 = vld [vmem:[%s460 + $0x10] sm:$0xff]
      %v613 = vld [vmem:[%s460 + $0x18] sm:$0xff]
      %s614 = smul.u32 %s24, 7
      %s615 = smul.u32 %s24, 14
      %s616 = scalar_lea.vmem [#allocation4], %s615
      %v617 = vld [vmem:[%s616] sm:$0x3]
      %v618 = vld [vmem:[#allocation2] sm:$0x3]
      %vm619 = vcmask 261120
      %v621 = vsel %vm619, %v618, 0
      %623 = vmatprep.subr.mxu0 0.0
      %624 = vmatpush1.msra.mxu0 0.0
      %625 = vmatprep.subr.mxu0 0.0
      %626 = vmatpush1.msra.mxu0 0.0
      %627 = vmatprep.subr.mxu0 0.0
      %628 = vmatpush1.msra.mxu0 0.0
      %629 = vmatprep.subr.mxu0 0.0
      %630 = vmatpush1.msra.mxu0 0.0
      %631 = vmatprep.subr.mxu0 0.0
      %632 = vmatpush1.msra.mxu0 0.0
      %633 = vmatprep.subr.mxu0 0.0
      %634 = vmatpush1.msra.mxu0 0.0
      %635 = vmatprep.subr.mxu0 0.0
      %636 = vmatpush1.msra.mxu0 0.0
      %637 = vmatprep.subr.mxu0 0.0
      %638 = vmatpush1.msra.mxu0 0.0
      %639 = vmatprep.subr.mxu0 0.0
      %640 = vmatpush1.msra.mxu0 0.0
      %641 = vmatprep.subr.mxu0 0.0
      %642 = vmatpush1.msra.mxu0 0.0
      %643 = vmatprep.subr.mxu0 0.0
      %644 = vmatpush1.msra.mxu0 0.0
      %645 = vmatprep.subr.mxu0 0.0
      %646 = vmatpush1.msra.mxu0 0.0
      %647 = vmatprep.subr.mxu0 0.0
      %648 = vmatpush1.msra.mxu0 %v613
      %649 = vmatprep.subr.mxu0 0.0
      %650 = vmatpush1.msra.mxu0 %v612
      %651 = vmatprep.subr.mxu0 0.0
      %652 = vmatpush1.msra.mxu0 %v611
      %653 = vmatprep.subr.mxu0 0.0
      %654 = vmatpush1.msra.mxu0 %v610
      %655 = vmatprep.subr.mxu0 0.0
      %656 = vmatpush2.msra.mxu0 0.0
      %657 = vmatprep.subr.mxu0 0.0
      %658 = vmatpush2.msra.mxu0 0.0
      %659 = vmatprep.subr.mxu0 0.0
      %660 = vmatpush2.msra.mxu0 0.0
      %661 = vmatprep.subr.mxu0 0.0
      %662 = vmatpush2.msra.mxu0 0.0
      %663 = vmatprep.subr.mxu0 0.0
      %664 = vmatpush2.msra.mxu0 0.0
      %665 = vmatprep.subr.mxu0 0.0
      %666 = vmatpush2.msra.mxu0 0.0
      %667 = vmatprep.subr.mxu0 0.0
      %668 = vmatpush2.msra.mxu0 0.0
      %669 = vmatprep.subr.mxu0 0.0
      %670 = vmatpush2.msra.mxu0 0.0
      %671 = vmatprep.subr.mxu0 0.0
      %672 = vmatpush2.msra.mxu0 0.0
      %673 = vmatprep.subr.mxu0 0.0
      %674 = vmatpush2.msra.mxu0 0.0
      %675 = vmatprep.subr.mxu0 0.0
      %676 = vmatpush2.msra.mxu0 0.0
      %677 = vmatprep.subr.mxu0 0.0
      %678 = vmatpush2.msra.mxu0 0.0
      %679 = vmatprep.subr.mxu0 0.0
      %680 = vmatpush2.msra.mxu0 0.0
      %681 = vmatprep.subr.mxu0 0.0
      %682 = vmatpush2.msra.mxu0 0.0
      %683 = vmatprep.subr.mxu0 0.0
      %684 = vmatpush2.msra.mxu0 0.0
      %685 = vmatprep.subr.mxu0 0.0
      %686 = vmatpush2.msra.mxu0 0.0
      %687 = vmatprep.mubr.f32.mxu0 0.0
      %688 = vmatmul.mubr.f32.gmra.mxu0 %v621
      %v689 = vpop.f32.mrf.mxu0
      %v690 = vadd.f32 0.0, %v689
      %v691 = vpop.f32.mrf.mxu0
      %692 = vdwg.mxu0
      %v693 = vadd.f32 %v617, %v690
      %v694 = vxor.u32 %v693, 2147483648
      %v695 = vmul.f32 %v694, 1.442695
      %v696 = vpow.pop %v695
      %v697 = vadd.f32 %v696, 1.0
      %v698 = vrcp.pop %v697
      %v699 = vmul.f32 1.0, %v698
      %v700 = vtanh.pop %v693
      %v701 = vld [vmem:[#allocation3] sm:$0x3]
      %703 = vrot.lane.b32.xlu0 %v701, 32
      %v704 = vpop.permute.xlu0 %703
      %v706 = vmul.f32 %v699, %v704
      %708 = vrot.lane.b32.xlu0 %v700, 64
      %v709 = vpop.permute.xlu0 %708
      %v711 = vmul.f32 %v699, %v709
      %713 = vrot.lane.b32.xlu0 %v711, 32
      %v714 = vpop.permute.xlu0 %713
      %v716 = vadd.f32 %v706, %v714
      %v717 = vtanh.pop %v716
      %719 = vrot.lane.b32.xlu0 %v717, 64
      %v720 = vpop.permute.xlu0 %719
      %v722 = vmul.f32 %v699, %v720
      %724 = vrot.lane.b32.xlu0 %v716, 96
      %v725 = vpop.permute.xlu0 %724
      %vm727 = vcmask 254976
      %728 = vst.msk [vmem:[#allocation3] sm:$0x3] %vm727, %v725
      %730 = vrot.lane.b32.xlu0 %v722, 32
      %v731 = vpop.permute.xlu0 %730
      %733 = vst.msk [vmem:[#allocation2] sm:$0x3] %vm727, %v731
      %s734 = smul.u32 %s614, 2
      %s735 = scalar_lea.vmem %s485, %s734
      %736 = vst.msk [vmem:[%s735] sm:$0x3] %vm727, %v731
      %s737 = ssub.s32 1, %s24
      %s738 = smul.u32 %s24, 6
      %s739 = sadd.s32 %s737, %s738
      %s740 = smul.u32 %s739, 2
      %s741 = scalar_lea.vmem [#allocation4], %s740
      %v742 = vld [vmem:[%s741] sm:$0x3]
      %v743 = vld [vmem:[#allocation2] sm:$0x3]
      %v745 = vsel %vm619, %v743, 0
      %747 = vmatprep.subr.mxu0 0.0
      %748 = vmatpush1.msra.mxu0 0.0
      %749 = vmatprep.subr.mxu0 0.0
      %750 = vmatpush1.msra.mxu0 0.0
      %751 = vmatprep.subr.mxu0 0.0
      %752 = vmatpush1.msra.mxu0 0.0
      %753 = vmatprep.subr.mxu0 0.0
      %754 = vmatpush1.msra.mxu0 0.0
      %755 = vmatprep.subr.mxu0 0.0
      %756 = vmatpush1.msra.mxu0 0.0
      %757 = vmatprep.subr.mxu0 0.0
      %758 = vmatpush1.msra.mxu0 0.0
      %759 = vmatprep.subr.mxu0 0.0
      %760 = vmatpush1.msra.mxu0 0.0
      %761 = vmatprep.subr.mxu0 0.0
      %762 = vmatpush1.msra.mxu0 0.0
      %763 = vmatprep.subr.mxu0 0.0
      %764 = vmatpush1.msra.mxu0 0.0
      %765 = vmatprep.subr.mxu0 0.0
      %766 = vmatpush1.msra.mxu0 0.0
      %767 = vmatprep.subr.mxu0 0.0
      %768 = vmatpush1.msra.mxu0 0.0
      %769 = vmatprep.subr.mxu0 0.0
      %770 = vmatpush1.msra.mxu0 0.0
      %771 = vmatprep.subr.mxu0 0.0
      %772 = vmatpush1.msra.mxu0 %v613
      %773 = vmatprep.subr.mxu0 0.0
      %774 = vmatpush1.msra.mxu0 %v612
      %775 = vmatprep.subr.mxu0 0.0
      %776 = vmatpush1.msra.mxu0 %v611
      %777 = vmatprep.subr.mxu0 0.0
      %778 = vmatpush1.msra.mxu0 %v610
      %779 = vmatprep.subr.mxu0 0.0
      %780 = vmatpush2.msra.mxu0 0.0
      %781 = vmatprep.subr.mxu0 0.0
      %782 = vmatpush2.msra.mxu0 0.0
      %783 = vmatprep.subr.mxu0 0.0
      %784 = vmatpush2.msra.mxu0 0.0
      %785 = vmatprep.subr.mxu0 0.0
      %786 = vmatpush2.msra.mxu0 0.0
      %787 = vmatprep.subr.mxu0 0.0
      %788 = vmatpush2.msra.mxu0 0.0
      %789 = vmatprep.subr.mxu0 0.0
      %790 = vmatpush2.msra.mxu0 0.0
      %791 = vmatprep.subr.mxu0 0.0
      %792 = vmatpush2.msra.mxu0 0.0
      %793 = vmatprep.subr.mxu0 0.0
      %794 = vmatpush2.msra.mxu0 0.0
      %795 = vmatprep.subr.mxu0 0.0
      %796 = vmatpush2.msra.mxu0 0.0
      %797 = vmatprep.subr.mxu0 0.0
      %798 = vmatpush2.msra.mxu0 0.0
      %799 = vmatprep.subr.mxu0 0.0
      %800 = vmatpush2.msra.mxu0 0.0
      %801 = vmatprep.subr.mxu0 0.0
      %802 = vmatpush2.msra.mxu0 0.0
      %803 = vmatprep.subr.mxu0 0.0
      %804 = vmatpush2.msra.mxu0 0.0
      %805 = vmatprep.subr.mxu0 0.0
      %806 = vmatpush2.msra.mxu0 0.0
      %807 = vmatprep.subr.mxu0 0.0
      %808 = vmatpush2.msra.mxu0 0.0
      %809 = vmatprep.subr.mxu0 0.0
      %810 = vmatpush2.msra.mxu0 0.0
      %811 = vmatprep.mubr.f32.mxu0 0.0
      %812 = vmatmul.mubr.f32.gmra.mxu0 %v745
      %v813 = vpop.f32.mrf.mxu0
      %v814 = vadd.f32 0.0, %v813
      %v815 = vpop.f32.mrf.mxu0
      %816 = vdwg.mxu0
      %v817 = vadd.f32 %v742, %v814
      %v818 = vxor.u32 %v817, 2147483648
      %v819 = vmul.f32 %v818, 1.442695
      %v820 = vpow.pop %v819
      %v821 = vadd.f32 %v820, 1.0
      %v822 = vrcp.pop %v821
      %v823 = vmul.f32 1.0, %v822
      %v824 = vtanh.pop %v817
      %v825 = vld [vmem:[#allocation3] sm:$0x3]
      %827 = vrot.lane.b32.xlu0 %v825, 32
      %v828 = vpop.permute.xlu0 %827
      %v830 = vmul.f32 %v823, %v828
      %832 = vrot.lane.b32.xlu0 %v824, 64
      %v833 = vpop.permute.xlu0 %832
      %v835 = vmul.f32 %v823, %v833
      %837 = vrot.lane.b32.xlu0 %v835, 32
      %v838 = vpop.permute.xlu0 %837
      %v840 = vadd.f32 %v830, %v838
      %v841 = vtanh.pop %v840
      %843 = vrot.lane.b32.xlu0 %v841, 64
      %v844 = vpop.permute.xlu0 %843
      %v846 = vmul.f32 %v823, %v844
      %848 = vrot.lane.b32.xlu0 %v840, 96
      %v849 = vpop.permute.xlu0 %848
      %851 = vst.msk [vmem:[#allocation3] sm:$0x3] %vm727, %v849
      %853 = vrot.lane.b32.xlu0 %v846, 32
      %v854 = vpop.permute.xlu0 %853
      %856 = vst.msk [vmem:[#allocation2] sm:$0x3] %vm727, %v854
      %s857 = scalar_lea.vmem %s485, %s740
      %858 = vst.msk [vmem:[%s857] sm:$0x3] %vm727, %v854
      %s859 = smul.u32 %s737, 2
      %s860 = smul.u32 %s24, 5
      %s861 = sadd.s32 %s859, %s860
      %s862 = smul.u32 %s861, 2
      %s863 = scalar_lea.vmem [#allocation4], %s862
      %v864 = vld [vmem:[%s863] sm:$0x3]
      %v865 = vld [vmem:[#allocation2] sm:$0x3]
      %v867 = vsel %vm619, %v865, 0
      %869 = vmatprep.subr.mxu0 0.0
      %870 = vmatpush1.msra.mxu0 0.0
      %871 = vmatprep.subr.mxu0 0.0
      %872 = vmatpush1.msra.mxu0 0.0
      %873 = vmatprep.subr.mxu0 0.0
      %874 = vmatpush1.msra.mxu0 0.0
      %875 = vmatprep.subr.mxu0 0.0
      %876 = vmatpush1.msra.mxu0 0.0
      %877 = vmatprep.subr.mxu0 0.0
      %878 = vmatpush1.msra.mxu0 0.0
      %879 = vmatprep.subr.mxu0 0.0
      %880 = vmatpush1.msra.mxu0 0.0
      %881 = vmatprep.subr.mxu0 0.0
      %882 = vmatpush1.msra.mxu0 0.0
      %883 = vmatprep.subr.mxu0 0.0
      %884 = vmatpush1.msra.mxu0 0.0
      %885 = vmatprep.subr.mxu0 0.0
      %886 = vmatpush1.msra.mxu0 0.0
      %887 = vmatprep.subr.mxu0 0.0
      %888 = vmatpush1.msra.mxu0 0.0
      %889 = vmatprep.subr.mxu0 0.0
      %890 = vmatpush1.msra.mxu0 0.0
      %891 = vmatprep.subr.mxu0 0.0
      %892 = vmatpush1.msra.mxu0 0.0
      %893 = vmatprep.subr.mxu0 0.0
      %894 = vmatpush1.msra.mxu0 %v613
      %895 = vmatprep.subr.mxu0 0.0
      %896 = vmatpush1.msra.mxu0 %v612
      %897 = vmatprep.subr.mxu0 0.0
      %898 = vmatpush1.msra.mxu0 %v611
      %899 = vmatprep.subr.mxu0 0.0
      %900 = vmatpush1.msra.mxu0 %v610
      %901 = vmatprep.subr.mxu0 0.0
      %902 = vmatpush2.msra.mxu0 0.0
      %903 = vmatprep.subr.mxu0 0.0
      %904 = vmatpush2.msra.mxu0 0.0
      %905 = vmatprep.subr.mxu0 0.0
      %906 = vmatpush2.msra.mxu0 0.0
      %907 = vmatprep.subr.mxu0 0.0
      %908 = vmatpush2.msra.mxu0 0.0
      %909 = vmatprep.subr.mxu0 0.0
      %910 = vmatpush2.msra.mxu0 0.0
      %911 = vmatprep.subr.mxu0 0.0
      %912 = vmatpush2.msra.mxu0 0.0
      %913 = vmatprep.subr.mxu0 0.0
      %914 = vmatpush2.msra.mxu0 0.0
      %915 = vmatprep.subr.mxu0 0.0
      %916 = vmatpush2.msra.mxu0 0.0
      %917 = vmatprep.subr.mxu0 0.0
      %918 = vmatpush2.msra.mxu0 0.0
      %919 = vmatprep.subr.mxu0 0.0
      %920 = vmatpush2.msra.mxu0 0.0
      %921 = vmatprep.subr.mxu0 0.0
      %922 = vmatpush2.msra.mxu0 0.0
      %923 = vmatprep.subr.mxu0 0.0
      %924 = vmatpush2.msra.mxu0 0.0
      %925 = vmatprep.subr.mxu0 0.0
      %926 = vmatpush2.msra.mxu0 0.0
      %927 = vmatprep.subr.mxu0 0.0
      %928 = vmatpush2.msra.mxu0 0.0
      %929 = vmatprep.subr.mxu0 0.0
      %930 = vmatpush2.msra.mxu0 0.0
      %931 = vmatprep.subr.mxu0 0.0
      %932 = vmatpush2.msra.mxu0 0.0
      %933 = vmatprep.mubr.f32.mxu0 0.0
      %934 = vmatmul.mubr.f32.gmra.mxu0 %v867
      %v935 = vpop.f32.mrf.mxu0
      %v936 = vadd.f32 0.0, %v935
      %v937 = vpop.f32.mrf.mxu0
      %938 = vdwg.mxu0
      %v939 = vadd.f32 %v864, %v936
      %v940 = vxor.u32 %v939, 2147483648
      %v941 = vmul.f32 %v940, 1.442695
      %v942 = vpow.pop %v941
      %v943 = vadd.f32 %v942, 1.0
      %v944 = vrcp.pop %v943
      %v945 = vmul.f32 1.0, %v944
      %v946 = vtanh.pop %v939
      %v947 = vld [vmem:[#allocation3] sm:$0x3]
      %949 = vrot.lane.b32.xlu0 %v947, 32
      %v950 = vpop.permute.xlu0 %949
      %v952 = vmul.f32 %v945, %v950
      %954 = vrot.lane.b32.xlu0 %v946, 64
      %v955 = vpop.permute.xlu0 %954
      %v957 = vmul.f32 %v945, %v955
      %959 = vrot.lane.b32.xlu0 %v957, 32
      %v960 = vpop.permute.xlu0 %959
      %v962 = vadd.f32 %v952, %v960
      %v963 = vtanh.pop %v962
      %965 = vrot.lane.b32.xlu0 %v963, 64
      %v966 = vpop.permute.xlu0 %965
      %v968 = vmul.f32 %v945, %v966
      %970 = vrot.lane.b32.xlu0 %v962, 96
      %v971 = vpop.permute.xlu0 %970
      %973 = vst.msk [vmem:[#allocation3] sm:$0x3] %vm727, %v971
      %975 = vrot.lane.b32.xlu0 %v968, 32
      %v976 = vpop.permute.xlu0 %975
      %978 = vst.msk [vmem:[#allocation2] sm:$0x3] %vm727, %v976
      %s979 = scalar_lea.vmem %s485, %s862
      %980 = vst.msk [vmem:[%s979] sm:$0x3] %vm727, %v976
      %s981 = smul.u32 %s737, 3
      %s982 = smul.u32 %s24, 4
      %s983 = sadd.s32 %s981, %s982
      %s984 = smul.u32 %s983, 2
      %s985 = scalar_lea.vmem [#allocation4], %s984
      %v986 = vld [vmem:[%s985] sm:$0x3]
      %v987 = vld [vmem:[#allocation2] sm:$0x3]
      %v989 = vsel %vm619, %v987, 0
      %991 = vmatprep.subr.mxu0 0.0
      %992 = vmatpush1.msra.mxu0 0.0
      %993 = vmatprep.subr.mxu0 0.0
      %994 = vmatpush1.msra.mxu0 0.0
      %995 = vmatprep.subr.mxu0 0.0
      %996 = vmatpush1.msra.mxu0 0.0
      %997 = vmatprep.subr.mxu0 0.0
      %998 = vmatpush1.msra.mxu0 0.0
      %999 = vmatprep.subr.mxu0 0.0
      %1000 = vmatpush1.msra.mxu0 0.0
      %1001 = vmatprep.subr.mxu0 0.0
      %1002 = vmatpush1.msra.mxu0 0.0
      %1003 = vmatprep.subr.mxu0 0.0
      %1004 = vmatpush1.msra.mxu0 0.0
      %1005 = vmatprep.subr.mxu0 0.0
      %1006 = vmatpush1.msra.mxu0 0.0
      %1007 = vmatprep.subr.mxu0 0.0
      %1008 = vmatpush1.msra.mxu0 0.0
      %1009 = vmatprep.subr.mxu0 0.0
      %1010 = vmatpush1.msra.mxu0 0.0
      %1011 = vmatprep.subr.mxu0 0.0
      %1012 = vmatpush1.msra.mxu0 0.0
      %1013 = vmatprep.subr.mxu0 0.0
      %1014 = vmatpush1.msra.mxu0 0.0
      %1015 = vmatprep.subr.mxu0 0.0
      %1016 = vmatpush1.msra.mxu0 %v613
      %1017 = vmatprep.subr.mxu0 0.0
      %1018 = vmatpush1.msra.mxu0 %v612
      %1019 = vmatprep.subr.mxu0 0.0
      %1020 = vmatpush1.msra.mxu0 %v611
      %1021 = vmatprep.subr.mxu0 0.0
      %1022 = vmatpush1.msra.mxu0 %v610
      %1023 = vmatprep.subr.mxu0 0.0
      %1024 = vmatpush2.msra.mxu0 0.0
      %1025 = vmatprep.subr.mxu0 0.0
      %1026 = vmatpush2.msra.mxu0 0.0
      %1027 = vmatprep.subr.mxu0 0.0
      %1028 = vmatpush2.msra.mxu0 0.0
      %1029 = vmatprep.subr.mxu0 0.0
      %1030 = vmatpush2.msra.mxu0 0.0
      %1031 = vmatprep.subr.mxu0 0.0
      %1032 = vmatpush2.msra.mxu0 0.0
      %1033 = vmatprep.subr.mxu0 0.0
      %1034 = vmatpush2.msra.mxu0 0.0
      %1035 = vmatprep.subr.mxu0 0.0
      %1036 = vmatpush2.msra.mxu0 0.0
      %1037 = vmatprep.subr.mxu0 0.0
      %1038 = vmatpush2.msra.mxu0 0.0
      %1039 = vmatprep.subr.mxu0 0.0
      %1040 = vmatpush2.msra.mxu0 0.0
      %1041 = vmatprep.subr.mxu0 0.0
      %1042 = vmatpush2.msra.mxu0 0.0
      %1043 = vmatprep.subr.mxu0 0.0
      %1044 = vmatpush2.msra.mxu0 0.0
      %1045 = vmatprep.subr.mxu0 0.0
      %1046 = vmatpush2.msra.mxu0 0.0
      %1047 = vmatprep.subr.mxu0 0.0
      %1048 = vmatpush2.msra.mxu0 0.0
      %1049 = vmatprep.subr.mxu0 0.0
      %1050 = vmatpush2.msra.mxu0 0.0
      %1051 = vmatprep.subr.mxu0 0.0
      %1052 = vmatpush2.msra.mxu0 0.0
      %1053 = vmatprep.subr.mxu0 0.0
      %1054 = vmatpush2.msra.mxu0 0.0
      %1055 = vmatprep.mubr.f32.mxu0 0.0
      %1056 = vmatmul.mubr.f32.gmra.mxu0 %v989
      %v1057 = vpop.f32.mrf.mxu0
      %v1058 = vadd.f32 0.0, %v1057
      %v1059 = vpop.f32.mrf.mxu0
      %1060 = vdwg.mxu0
      %v1061 = vadd.f32 %v986, %v1058
      %v1062 = vxor.u32 %v1061, 2147483648
      %v1063 = vmul.f32 %v1062, 1.442695
      %v1064 = vpow.pop %v1063
      %v1065 = vadd.f32 %v1064, 1.0
      %v1066 = vrcp.pop %v1065
      %v1067 = vmul.f32 1.0, %v1066
      %v1068 = vtanh.pop %v1061
      %v1069 = vld [vmem:[#allocation3] sm:$0x3]
      %1071 = vrot.lane.b32.xlu0 %v1069, 32
      %v1072 = vpop.permute.xlu0 %1071
      %v1074 = vmul.f32 %v1067, %v1072
      %1076 = vrot.lane.b32.xlu0 %v1068, 64
      %v1077 = vpop.permute.xlu0 %1076
      %v1079 = vmul.f32 %v1067, %v1077
      %1081 = vrot.lane.b32.xlu0 %v1079, 32
      %v1082 = vpop.permute.xlu0 %1081
      %v1084 = vadd.f32 %v1074, %v1082
      %v1085 = vtanh.pop %v1084
      %1087 = vrot.lane.b32.xlu0 %v1085, 64
      %v1088 = vpop.permute.xlu0 %1087
      %v1090 = vmul.f32 %v1067, %v1088
      %1092 = vrot.lane.b32.xlu0 %v1084, 96
      %v1093 = vpop.permute.xlu0 %1092
      %1095 = vst.msk [vmem:[#allocation3] sm:$0x3] %vm727, %v1093
      %1097 = vrot.lane.b32.xlu0 %v1090, 32
      %v1098 = vpop.permute.xlu0 %1097
      %1100 = vst.msk [vmem:[#allocation2] sm:$0x3] %vm727, %v1098
      %s1101 = scalar_lea.vmem %s485, %s984
      %1102 = vst.msk [vmem:[%s1101] sm:$0x3] %vm727, %v1098
      %s1103 = smul.u32 %s737, 4
      %s1104 = smul.u32 %s24, 3
      %s1105 = sadd.s32 %s1103, %s1104
      %s1106 = smul.u32 %s1105, 2
      %s1107 = scalar_lea.vmem [#allocation4], %s1106
      %v1108 = vld [vmem:[%s1107] sm:$0x3]
      %v1109 = vld [vmem:[#allocation2] sm:$0x3]
      %v1111 = vsel %vm619, %v1109, 0
      %1113 = vmatprep.subr.mxu0 0.0
      %1114 = vmatpush1.msra.mxu0 0.0
      %1115 = vmatprep.subr.mxu0 0.0
      %1116 = vmatpush1.msra.mxu0 0.0
      %1117 = vmatprep.subr.mxu0 0.0
      %1118 = vmatpush1.msra.mxu0 0.0
      %1119 = vmatprep.subr.mxu0 0.0
      %1120 = vmatpush1.msra.mxu0 0.0
      %1121 = vmatprep.subr.mxu0 0.0
      %1122 = vmatpush1.msra.mxu0 0.0
      %1123 = vmatprep.subr.mxu0 0.0
      %1124 = vmatpush1.msra.mxu0 0.0
      %1125 = vmatprep.subr.mxu0 0.0
      %1126 = vmatpush1.msra.mxu0 0.0
      %1127 = vmatprep.subr.mxu0 0.0
      %1128 = vmatpush1.msra.mxu0 0.0
      %1129 = vmatprep.subr.mxu0 0.0
      %1130 = vmatpush1.msra.mxu0 0.0
      %1131 = vmatprep.subr.mxu0 0.0
      %1132 = vmatpush1.msra.mxu0 0.0
      %1133 = vmatprep.subr.mxu0 0.0
      %1134 = vmatpush1.msra.mxu0 0.0
      %1135 = vmatprep.subr.mxu0 0.0
      %1136 = vmatpush1.msra.mxu0 0.0
      %1137 = vmatprep.subr.mxu0 0.0
      %1138 = vmatpush1.msra.mxu0 %v613
      %1139 = vmatprep.subr.mxu0 0.0
      %1140 = vmatpush1.msra.mxu0 %v612
      %1141 = vmatprep.subr.mxu0 0.0
      %1142 = vmatpush1.msra.mxu0 %v611
      %1143 = vmatprep.subr.mxu0 0.0
      %1144 = vmatpush1.msra.mxu0 %v610
      %1145 = vmatprep.subr.mxu0 0.0
      %1146 = vmatpush2.msra.mxu0 0.0
      %1147 = vmatprep.subr.mxu0 0.0
      %1148 = vmatpush2.msra.mxu0 0.0
      %1149 = vmatprep.subr.mxu0 0.0
      %1150 = vmatpush2.msra.mxu0 0.0
      %1151 = vmatprep.subr.mxu0 0.0
      %1152 = vmatpush2.msra.mxu0 0.0
      %1153 = vmatprep.subr.mxu0 0.0
      %1154 = vmatpush2.msra.mxu0 0.0
      %1155 = vmatprep.subr.mxu0 0.0
      %1156 = vmatpush2.msra.mxu0 0.0
      %1157 = vmatprep.subr.mxu0 0.0
      %1158 = vmatpush2.msra.mxu0 0.0
      %1159 = vmatprep.subr.mxu0 0.0
      %1160 = vmatpush2.msra.mxu0 0.0
      %1161 = vmatprep.subr.mxu0 0.0
      %1162 = vmatpush2.msra.mxu0 0.0
      %1163 = vmatprep.subr.mxu0 0.0
      %1164 = vmatpush2.msra.mxu0 0.0
      %1165 = vmatprep.subr.mxu0 0.0
      %1166 = vmatpush2.msra.mxu0 0.0
      %1167 = vmatprep.subr.mxu0 0.0
      %1168 = vmatpush2.msra.mxu0 0.0
      %1169 = vmatprep.subr.mxu0 0.0
      %1170 = vmatpush2.msra.mxu0 0.0
      %1171 = vmatprep.subr.mxu0 0.0
      %1172 = vmatpush2.msra.mxu0 0.0
      %1173 = vmatprep.subr.mxu0 0.0
      %1174 = vmatpush2.msra.mxu0 0.0
      %1175 = vmatprep.subr.mxu0 0.0
      %1176 = vmatpush2.msra.mxu0 0.0
      %1177 = vmatprep.mubr.f32.mxu0 0.0
      %1178 = vmatmul.mubr.f32.gmra.mxu0 %v1111
      %v1179 = vpop.f32.mrf.mxu0
      %v1180 = vadd.f32 0.0, %v1179
      %v1181 = vpop.f32.mrf.mxu0
      %1182 = vdwg.mxu0
      %v1183 = vadd.f32 %v1108, %v1180
      %v1184 = vxor.u32 %v1183, 2147483648
      %v1185 = vmul.f32 %v1184, 1.442695
      %v1186 = vpow.pop %v1185
      %v1187 = vadd.f32 %v1186, 1.0
      %v1188 = vrcp.pop %v1187
      %v1189 = vmul.f32 1.0, %v1188
      %v1190 = vtanh.pop %v1183
      %v1191 = vld [vmem:[#allocation3] sm:$0x3]
      %1193 = vrot.lane.b32.xlu0 %v1191, 32
      %v1194 = vpop.permute.xlu0 %1193
      %v1196 = vmul.f32 %v1189, %v1194
      %1198 = vrot.lane.b32.xlu0 %v1190, 64
      %v1199 = vpop.permute.xlu0 %1198
      %v1201 = vmul.f32 %v1189, %v1199
      %1203 = vrot.lane.b32.xlu0 %v1201, 32
      %v1204 = vpop.permute.xlu0 %1203
      %v1206 = vadd.f32 %v1196, %v1204
      %v1207 = vtanh.pop %v1206
      %1209 = vrot.lane.b32.xlu0 %v1207, 64
      %v1210 = vpop.permute.xlu0 %1209
      %v1212 = vmul.f32 %v1189, %v1210
      %1214 = vrot.lane.b32.xlu0 %v1206, 96
      %v1215 = vpop.permute.xlu0 %1214
      %1217 = vst.msk [vmem:[#allocation3] sm:$0x3] %vm727, %v1215
      %1219 = vrot.lane.b32.xlu0 %v1212, 32
      %v1220 = vpop.permute.xlu0 %1219
      %1222 = vst.msk [vmem:[#allocation2] sm:$0x3] %vm727, %v1220
      %s1223 = scalar_lea.vmem %s485, %s1106
      %1224 = vst.msk [vmem:[%s1223] sm:$0x3] %vm727, %v1220
      %s1225 = smul.u32 %s737, 5
      %s1226 = smul.u32 %s24, 2
      %s1227 = sadd.s32 %s1225, %s1226
      %s1228 = smul.u32 %s1227, 2
      %s1229 = scalar_lea.vmem [#allocation4], %s1228
      %v1230 = vld [vmem:[%s1229] sm:$0x3]
      %v1231 = vld [vmem:[#allocation2] sm:$0x3]
      %v1233 = vsel %vm619, %v1231, 0
      %1235 = vmatprep.subr.mxu0 0.0
      %1236 = vmatpush1.msra.mxu0 0.0
      %1237 = vmatprep.subr.mxu0 0.0
      %1238 = vmatpush1.msra.mxu0 0.0
      %1239 = vmatprep.subr.mxu0 0.0
      %1240 = vmatpush1.msra.mxu0 0.0
      %1241 = vmatprep.subr.mxu0 0.0
      %1242 = vmatpush1.msra.mxu0 0.0
      %1243 = vmatprep.subr.mxu0 0.0
      %1244 = vmatpush1.msra.mxu0 0.0
      %1245 = vmatprep.subr.mxu0 0.0
      %1246 = vmatpush1.msra.mxu0 0.0
      %1247 = vmatprep.subr.mxu0 0.0
      %1248 = vmatpush1.msra.mxu0 0.0
      %1249 = vmatprep.subr.mxu0 0.0
      %1250 = vmatpush1.msra.mxu0 0.0
      %1251 = vmatprep.subr.mxu0 0.0
      %1252 = vmatpush1.msra.mxu0 0.0
      %1253 = vmatprep.subr.mxu0 0.0
      %1254 = vmatpush1.msra.mxu0 0.0
      %1255 = vmatprep.subr.mxu0 0.0
      %1256 = vmatpush1.msra.mxu0 0.0
      %1257 = vmatprep.subr.mxu0 0.0
      %1258 = vmatpush1.msra.mxu0 0.0
      %1259 = vmatprep.subr.mxu0 0.0
      %1260 = vmatpush1.msra.mxu0 %v613
      %1261 = vmatprep.subr.mxu0 0.0
      %1262 = vmatpush1.msra.mxu0 %v612
      %1263 = vmatprep.subr.mxu0 0.0
      %1264 = vmatpush1.msra.mxu0 %v611
      %1265 = vmatprep.subr.mxu0 0.0
      %1266 = vmatpush1.msra.mxu0 %v610
      %1267 = vmatprep.subr.mxu0 0.0
      %1268 = vmatpush2.msra.mxu0 0.0
      %1269 = vmatprep.subr.mxu0 0.0
      %1270 = vmatpush2.msra.mxu0 0.0
      %1271 = vmatprep.subr.mxu0 0.0
      %1272 = vmatpush2.msra.mxu0 0.0
      %1273 = vmatprep.subr.mxu0 0.0
      %1274 = vmatpush2.msra.mxu0 0.0
      %1275 = vmatprep.subr.mxu0 0.0
      %1276 = vmatpush2.msra.mxu0 0.0
      %1277 = vmatprep.subr.mxu0 0.0
      %1278 = vmatpush2.msra.mxu0 0.0
      %1279 = vmatprep.subr.mxu0 0.0
      %1280 = vmatpush2.msra.mxu0 0.0
      %1281 = vmatprep.subr.mxu0 0.0
      %1282 = vmatpush2.msra.mxu0 0.0
      %1283 = vmatprep.subr.mxu0 0.0
      %1284 = vmatpush2.msra.mxu0 0.0
      %1285 = vmatprep.subr.mxu0 0.0
      %1286 = vmatpush2.msra.mxu0 0.0
      %1287 = vmatprep.subr.mxu0 0.0
      %1288 = vmatpush2.msra.mxu0 0.0
      %1289 = vmatprep.subr.mxu0 0.0
      %1290 = vmatpush2.msra.mxu0 0.0
      %1291 = vmatprep.subr.mxu0 0.0
      %1292 = vmatpush2.msra.mxu0 0.0
      %1293 = vmatprep.subr.mxu0 0.0
      %1294 = vmatpush2.msra.mxu0 0.0
      %1295 = vmatprep.subr.mxu0 0.0
      %1296 = vmatpush2.msra.mxu0 0.0
      %1297 = vmatprep.subr.mxu0 0.0
      %1298 = vmatpush2.msra.mxu0 0.0
      %1299 = vmatprep.mubr.f32.mxu0 0.0
      %1300 = vmatmul.mubr.f32.gmra.mxu0 %v1233
      %v1301 = vpop.f32.mrf.mxu0
      %v1302 = vadd.f32 0.0, %v1301
      %v1303 = vpop.f32.mrf.mxu0
      %1304 = vdwg.mxu0
      %v1305 = vadd.f32 %v1230, %v1302
      %v1306 = vxor.u32 %v1305, 2147483648
      %v1307 = vmul.f32 %v1306, 1.442695
      %v1308 = vpow.pop %v1307
      %v1309 = vadd.f32 %v1308, 1.0
      %v1310 = vrcp.pop %v1309
      %v1311 = vmul.f32 1.0, %v1310
      %v1312 = vtanh.pop %v1305
      %v1313 = vld [vmem:[#allocation3] sm:$0x3]
      %1315 = vrot.lane.b32.xlu0 %v1313, 32
      %v1316 = vpop.permute.xlu0 %1315
      %v1318 = vmul.f32 %v1311, %v1316
      %1320 = vrot.lane.b32.xlu0 %v1312, 64
      %v1321 = vpop.permute.xlu0 %1320
      %v1323 = vmul.f32 %v1311, %v1321
      %1325 = vrot.lane.b32.xlu0 %v1323, 32
      %v1326 = vpop.permute.xlu0 %1325
      %v1328 = vadd.f32 %v1318, %v1326
      %v1329 = vtanh.pop %v1328
      %1331 = vrot.lane.b32.xlu0 %v1329, 64
      %v1332 = vpop.permute.xlu0 %1331
      %v1334 = vmul.f32 %v1311, %v1332
      %1336 = vrot.lane.b32.xlu0 %v1328, 96
      %v1337 = vpop.permute.xlu0 %1336
      %1339 = vst.msk [vmem:[#allocation3] sm:$0x3] %vm727, %v1337
      %1341 = vrot.lane.b32.xlu0 %v1334, 32
      %v1342 = vpop.permute.xlu0 %1341
      %1344 = vst.msk [vmem:[#allocation2] sm:$0x3] %vm727, %v1342
      %s1345 = scalar_lea.vmem %s485, %s1228
      %1346 = vst.msk [vmem:[%s1345] sm:$0x3] %vm727, %v1342
      %s1347 = smul.u32 %s737, 6
      %s1348 = sadd.s32 %s1347, %s24
      %s1349 = smul.u32 %s1348, 2
      %s1350 = scalar_lea.vmem [#allocation4], %s1349
      %v1351 = vld [vmem:[%s1350] sm:$0x3]
      %v1352 = vld [vmem:[#allocation2] sm:$0x3]
      %v1354 = vsel %vm619, %v1352, 0
      %1356 = vmatprep.subr.mxu0 0.0
      %1357 = vmatpush1.msra.mxu0 0.0
      %1358 = vmatprep.subr.mxu0 0.0
      %1359 = vmatpush1.msra.mxu0 0.0
      %1360 = vmatprep.subr.mxu0 0.0
      %1361 = vmatpush1.msra.mxu0 0.0
      %1362 = vmatprep.subr.mxu0 0.0
      %1363 = vmatpush1.msra.mxu0 0.0
      %1364 = vmatprep.subr.mxu0 0.0
      %1365 = vmatpush1.msra.mxu0 0.0
      %1366 = vmatprep.subr.mxu0 0.0
      %1367 = vmatpush1.msra.mxu0 0.0
      %1368 = vmatprep.subr.mxu0 0.0
      %1369 = vmatpush1.msra.mxu0 0.0
      %1370 = vmatprep.subr.mxu0 0.0
      %1371 = vmatpush1.msra.mxu0 0.0
      %1372 = vmatprep.subr.mxu0 0.0
      %1373 = vmatpush1.msra.mxu0 0.0
      %1374 = vmatprep.subr.mxu0 0.0
      %1375 = vmatpush1.msra.mxu0 0.0
      %1376 = vmatprep.subr.mxu0 0.0
      %1377 = vmatpush1.msra.mxu0 0.0
      %1378 = vmatprep.subr.mxu0 0.0
      %1379 = vmatpush1.msra.mxu0 0.0
      %1380 = vmatprep.subr.mxu0 0.0
      %1381 = vmatpush1.msra.mxu0 %v613
      %1382 = vmatprep.subr.mxu0 0.0
      %1383 = vmatpush1.msra.mxu0 %v612
      %1384 = vmatprep.subr.mxu0 0.0
      %1385 = vmatpush1.msra.mxu0 %v611
      %1386 = vmatprep.subr.mxu0 0.0
      %1387 = vmatpush1.msra.mxu0 %v610
      %1388 = vmatprep.subr.mxu0 0.0
      %1389 = vmatpush2.msra.mxu0 0.0
      %1390 = vmatprep.subr.mxu0 0.0
      %1391 = vmatpush2.msra.mxu0 0.0
      %1392 = vmatprep.subr.mxu0 0.0
      %1393 = vmatpush2.msra.mxu0 0.0
      %1394 = vmatprep.subr.mxu0 0.0
      %1395 = vmatpush2.msra.mxu0 0.0
      %1396 = vmatprep.subr.mxu0 0.0
      %1397 = vmatpush2.msra.mxu0 0.0
      %1398 = vmatprep.subr.mxu0 0.0
      %1399 = vmatpush2.msra.mxu0 0.0
      %1400 = vmatprep.subr.mxu0 0.0
      %1401 = vmatpush2.msra.mxu0 0.0
      %1402 = vmatprep.subr.mxu0 0.0
      %1403 = vmatpush2.msra.mxu0 0.0
      %1404 = vmatprep.subr.mxu0 0.0
      %1405 = vmatpush2.msra.mxu0 0.0
      %1406 = vmatprep.subr.mxu0 0.0
      %1407 = vmatpush2.msra.mxu0 0.0
      %1408 = vmatprep.subr.mxu0 0.0
      %1409 = vmatpush2.msra.mxu0 0.0
      %1410 = vmatprep.subr.mxu0 0.0
      %1411 = vmatpush2.msra.mxu0 0.0
      %1412 = vmatprep.subr.mxu0 0.0
      %1413 = vmatpush2.msra.mxu0 0.0
      %1414 = vmatprep.subr.mxu0 0.0
      %1415 = vmatpush2.msra.mxu0 0.0
      %1416 = vmatprep.subr.mxu0 0.0
      %1417 = vmatpush2.msra.mxu0 0.0
      %1418 = vmatprep.subr.mxu0 0.0
      %1419 = vmatpush2.msra.mxu0 0.0
      %1420 = vmatprep.mubr.f32.mxu0 0.0
      %1421 = vmatmul.mubr.f32.gmra.mxu0 %v1354
      %v1422 = vpop.f32.mrf.mxu0
      %v1423 = vadd.f32 0.0, %v1422
      %v1424 = vpop.f32.mrf.mxu0
      %1425 = vdwg.mxu0
      %v1426 = vadd.f32 %v1351, %v1423
      %v1427 = vxor.u32 %v1426, 2147483648
      %v1428 = vmul.f32 %v1427, 1.442695
      %v1429 = vpow.pop %v1428
      %v1430 = vadd.f32 %v1429, 1.0
      %v1431 = vrcp.pop %v1430
      %v1432 = vmul.f32 1.0, %v1431
      %v1433 = vtanh.pop %v1426
      %v1434 = vld [vmem:[#allocation3] sm:$0x3]
      %1436 = vrot.lane.b32.xlu0 %v1434, 32
      %v1437 = vpop.permute.xlu0 %1436
      %v1439 = vmul.f32 %v1432, %v1437
      %1441 = vrot.lane.b32.xlu0 %v1433, 64
      %v1442 = vpop.permute.xlu0 %1441
      %v1444 = vmul.f32 %v1432, %v1442
      %1446 = vrot.lane.b32.xlu0 %v1444, 32
      %v1447 = vpop.permute.xlu0 %1446
      %v1449 = vadd.f32 %v1439, %v1447
      %v1450 = vtanh.pop %v1449
      %1452 = vrot.lane.b32.xlu0 %v1450, 64
      %v1453 = vpop.permute.xlu0 %1452
      %v1455 = vmul.f32 %v1432, %v1453
      %1457 = vrot.lane.b32.xlu0 %v1449, 96
      %v1458 = vpop.permute.xlu0 %1457
      %1460 = vst.msk [vmem:[#allocation3] sm:$0x3] %vm727, %v1458
      %1462 = vrot.lane.b32.xlu0 %v1455, 32
      %v1463 = vpop.permute.xlu0 %1462
      %1465 = vst.msk [vmem:[#allocation2] sm:$0x3] %vm727, %v1463
      %s1466 = scalar_lea.vmem %s485, %s1349
      %1467 = vst.msk [vmem:[%s1466] sm:$0x3] %vm727, %v1463
      %s1468 = smul.u32 %s737, 7
      %s1469 = smul.u32 %s737, 14
      %s1470 = scalar_lea.vmem [#allocation4], %s1469
      %v1471 = vld [vmem:[%s1470] sm:$0x3]
      %v1472 = vld [vmem:[#allocation2] sm:$0x3]
      %v1474 = vsel %vm619, %v1472, 0
      %1476 = vmatprep.subr.mxu0 0.0
      %1477 = vmatpush1.msra.mxu0 0.0
      %1478 = vmatprep.subr.mxu0 0.0
      %1479 = vmatpush1.msra.mxu0 0.0
      %1480 = vmatprep.subr.mxu0 0.0
      %1481 = vmatpush1.msra.mxu0 0.0
      %1482 = vmatprep.subr.mxu0 0.0
      %1483 = vmatpush1.msra.mxu0 0.0
      %1484 = vmatprep.subr.mxu0 0.0
      %1485 = vmatpush1.msra.mxu0 0.0
      %1486 = vmatprep.subr.mxu0 0.0
      %1487 = vmatpush1.msra.mxu0 0.0
      %1488 = vmatprep.subr.mxu0 0.0
      %1489 = vmatpush1.msra.mxu0 0.0
      %1490 = vmatprep.subr.mxu0 0.0
      %1491 = vmatpush1.msra.mxu0 0.0
      %1492 = vmatprep.subr.mxu0 0.0
      %1493 = vmatpush1.msra.mxu0 0.0
      %1494 = vmatprep.subr.mxu0 0.0
      %1495 = vmatpush1.msra.mxu0 0.0
      %1496 = vmatprep.subr.mxu0 0.0
      %1497 = vmatpush1.msra.mxu0 0.0
      %1498 = vmatprep.subr.mxu0 0.0
      %1499 = vmatpush1.msra.mxu0 0.0
      %1500 = vmatprep.subr.mxu0 0.0
      %1501 = vmatpush1.msra.mxu0 %v613
      %1502 = vmatprep.subr.mxu0 0.0
      %1503 = vmatpush1.msra.mxu0 %v612
      %1504 = vmatprep.subr.mxu0 0.0
      %1505 = vmatpush1.msra.mxu0 %v611
      %1506 = vmatprep.subr.mxu0 0.0
      %1507 = vmatpush1.msra.mxu0 %v610
      %1508 = vmatprep.subr.mxu0 0.0
      %1509 = vmatpush2.msra.mxu0 0.0
      %1510 = vmatprep.subr.mxu0 0.0
      %1511 = vmatpush2.msra.mxu0 0.0
      %1512 = vmatprep.subr.mxu0 0.0
      %1513 = vmatpush2.msra.mxu0 0.0
      %1514 = vmatprep.subr.mxu0 0.0
      %1515 = vmatpush2.msra.mxu0 0.0
      %1516 = vmatprep.subr.mxu0 0.0
      %1517 = vmatpush2.msra.mxu0 0.0
      %1518 = vmatprep.subr.mxu0 0.0
      %1519 = vmatpush2.msra.mxu0 0.0
      %1520 = vmatprep.subr.mxu0 0.0
      %1521 = vmatpush2.msra.mxu0 0.0
      %1522 = vmatprep.subr.mxu0 0.0
      %1523 = vmatpush2.msra.mxu0 0.0
      %1524 = vmatprep.subr.mxu0 0.0
      %1525 = vmatpush2.msra.mxu0 0.0
      %1526 = vmatprep.subr.mxu0 0.0
      %1527 = vmatpush2.msra.mxu0 0.0
      %1528 = vmatprep.subr.mxu0 0.0
      %1529 = vmatpush2.msra.mxu0 0.0
      %1530 = vmatprep.subr.mxu0 0.0
      %1531 = vmatpush2.msra.mxu0 0.0
      %1532 = vmatprep.subr.mxu0 0.0
      %1533 = vmatpush2.msra.mxu0 0.0
      %1534 = vmatprep.subr.mxu0 0.0
      %1535 = vmatpush2.msra.mxu0 0.0
      %1536 = vmatprep.subr.mxu0 0.0
      %1537 = vmatpush2.msra.mxu0 0.0
      %1538 = vmatprep.subr.mxu0 0.0
      %1539 = vmatpush2.msra.mxu0 0.0
      %1540 = vmatprep.mubr.f32.mxu0 0.0
      %1541 = vmatmul.mubr.f32.gmra.mxu0 %v1474
      %v1542 = vpop.f32.mrf.mxu0
      %v1543 = vadd.f32 0.0, %v1542
      %v1544 = vpop.f32.mrf.mxu0
      %1545 = vdwg.mxu0
      %v1546 = vadd.f32 %v1471, %v1543
      %v1547 = vxor.u32 %v1546, 2147483648
      %v1548 = vmul.f32 %v1547, 1.442695
      %v1549 = vpow.pop %v1548
      %v1550 = vadd.f32 %v1549, 1.0
      %v1551 = vrcp.pop %v1550
      %v1552 = vmul.f32 1.0, %v1551
      %v1553 = vtanh.pop %v1546
      %v1554 = vld [vmem:[#allocation3] sm:$0x3]
      %1556 = vrot.lane.b32.xlu0 %v1554, 32
      %v1557 = vpop.permute.xlu0 %1556
      %v1559 = vmul.f32 %v1552, %v1557
      %1561 = vrot.lane.b32.xlu0 %v1553, 64
      %v1562 = vpop.permute.xlu0 %1561
      %v1564 = vmul.f32 %v1552, %v1562
      %1566 = vrot.lane.b32.xlu0 %v1564, 32
      %v1567 = vpop.permute.xlu0 %1566
      %v1569 = vadd.f32 %v1559, %v1567
      %v1570 = vtanh.pop %v1569
      %1572 = vrot.lane.b32.xlu0 %v1570, 64
      %v1573 = vpop.permute.xlu0 %1572
      %v1575 = vmul.f32 %v1552, %v1573
      %1577 = vrot.lane.b32.xlu0 %v1569, 96
      %v1578 = vpop.permute.xlu0 %1577
      %1580 = vst.msk [vmem:[#allocation3] sm:$0x3] %vm727, %v1578
      %1582 = vrot.lane.b32.xlu0 %v1575, 32
      %v1583 = vpop.permute.xlu0 %1582
      %1585 = vst.msk [vmem:[#allocation2] sm:$0x3] %vm727, %v1583
      %s1586 = smul.u32 %s1468, 2
      %s1587 = scalar_lea.vmem %s485, %s1586
      %1588 = vst.msk [vmem:[%s1587] sm:$0x3] %vm727, %v1583
      // Predicated region
      $region49: #{encoder_lstm_forward.2} parent=43 // pred_check
        %p1589 = pneg %p500
      $region50: #{encoder_lstm_forward.2} parent=43 // pred_check_branch
        %1591 = sbr.rel (%p1589) target = $region52
      $region51: #{encoder_lstm_forward.2} parent=43 // pred_region
        %v1592 = vld [vmem:[#allocation2] sm:$0x3]
        %1593 = vst.msk [vmem:[%s495] sm:$0x3] %vm727, %v1592
        %v1594 = vld [vmem:[#allocation3] sm:$0x3]
        %1595 = vst.msk [vmem:[%s499] sm:$0x3] %vm727, %v1594
      $region52: #{encoder_lstm_forward.2} parent=43 // pred_fallthru
        _
      %s1596 = ssub.s32 1, %s24
      %s1597 = smul.u32 %s1596, %s25
      %s1598 = ssub.s32 0, %s25
      %s1599 = smul.u32 %s24, %s1598
      %s1600 = sadd.s32 %s1597, %s1599
      %s1601 = smul.u32 8, %s1600
      %p1602 = scmp.lt.s32.totalorder %s24, 1
      %s1603 = scalar_select %p1602, %s24, 1
      %p1604 = scmp.lt.s32.totalorder %s1601, 7
      %s1605 = scalar_select %p1604, %s1601, 7
      %s1606 = smul.addr %s1603, 8
      %s1607 = sadd.s32 %s1605, %s1606
      %s1608 = smul.addr %s1607, 2
      %s1609 = scalar_lea.vmem %s6, %s1608
      %p1610 = scmp.lt.s32.totalorder %s24, 1
      %s1611 = scalar_select %p1610, %s24, 1
      %s1612 = smul.addr %s1611, 2
      %s1613 = scalar_lea.vmem %s7, %s1612
      %p1614 = scmp.lt.s32.totalorder %s24, 1
      %s1615 = scalar_select %p1614, %s24, 1
      %s1616 = smul.addr %s1615, 2
      %s1617 = scalar_lea.vmem %s8, %s1616
      // Predicated region
      $region53: #{encoder_lstm_forward.2} parent=43 // pred_check
        %p1618 = pneg %p228
      $region54: #{encoder_lstm_forward.2} parent=43 // pred_check_branch
        %1620 = sbr.rel (%p1618) target = $region56
      $region55: #{encoder_lstm_forward.2} parent=43 // pred_region
        %s1621 = ssub.s32 1, %s24
        %s1622 = smul.u32 %s1621, %s25
        %s1623 = ssub.s32 0, %s25
        %s1624 = smul.u32 %s24, %s1623
        %s1625 = sadd.s32 %s1622, %s1624
        %s1626 = smul.u32 8, %s1625
      $region56: #{encoder_lstm_forward.2} parent=43 // pred_fallthru
        _
      // Predicated region
      $region57: #{encoder_lstm_forward.2} parent=43 // pred_check
        %p1627 = pneg %p254
      $region58: #{encoder_lstm_forward.2} parent=43 // pred_check_branch
        %1629 = sbr.rel (%p1627) target = $region60
      $region59: #{encoder_lstm_forward.2} parent=43 // pred_region
        _
      $region60: #{encoder_lstm_forward.2} parent=43 // pred_fallthru
        _
      // Predicated region
      $region61: #{encoder_lstm_forward.2} parent=43 // pred_check
        %p1630 = pneg %p280
      $region62: #{encoder_lstm_forward.2} parent=43 // pred_check_branch
        %1632 = sbr.rel (%p1630) target = $region64
      $region63: #{encoder_lstm_forward.2} parent=43 // pred_region
        _
      $region64: #{encoder_lstm_forward.2} parent=43 // pred_fallthru
        _
    $region44: #{encoder_lstm_forward.2} parent=5 // pred_fallthru
      _
    %p1633 = scmp.le.s32.totalorder 2, %s15
    // Predicated region
    $region65: #{encoder_lstm_forward.2} parent=5 // pred_check
      %p1634 = pneg %p1633
    $region66: #{encoder_lstm_forward.2} parent=5 // pred_check_branch
      %1636 = sbr.rel (%p1634) target = $region68
    $region67: #{encoder_lstm_forward.2} parent=5 // pred_region
      %s1637 = ssub.s32 %s15, 2
      // Predicated region
      $region69: #{encoder_lstm_forward.2} parent=67 // pred_check
        %p1638 = pneg %p234
      $region70: #{encoder_lstm_forward.2} parent=67 // pred_check_branch
        %1640 = sbr.rel (%p1638) target = $region72
      $region71: #{encoder_lstm_forward.2} parent=67 // pred_region
        %s1641 = ssub.s32 1, %s26
        %s1642 = smul.u32 %s1641, %s27
        %s1643 = ssub.s32 0, %s27
        %s1644 = smul.u32 %s26, %s1643
        %s1645 = sadd.s32 %s1642, %s1644
        %s1646 = smul.u32 8, %s1645
        %p1647 = scmp.lt.s32.totalorder %s26, 1
        %s1648 = scalar_select %p1647, %s26, 1
        %p1649 = scmp.lt.s32.totalorder %s1646, 7
        %s1650 = scalar_select %p1649, %s1646, 7
        %s1651 = smul.addr %s1648, 8
        %s1652 = sadd.s32 %s1650, %s1651
        %s1653 = smul.addr %s1652, 2
        %s1654 = scalar_lea.vmem %s6, %s1653
      $region72: #{encoder_lstm_forward.2} parent=67 // pred_fallthru
        _
      // Predicated region
      $region73: #{encoder_lstm_forward.2} parent=67 // pred_check
        %p1655 = pneg %p260
      $region74: #{encoder_lstm_forward.2} parent=67 // pred_check_branch
        %1657 = sbr.rel (%p1655) target = $region76
      $region75: #{encoder_lstm_forward.2} parent=67 // pred_region
        %p1658 = scmp.lt.s32.totalorder %s26, 1
        %s1659 = scalar_select %p1658, %s26, 1
        %s1660 = smul.addr %s1659, 2
        %s1661 = scalar_lea.vmem %s7, %s1660
      $region76: #{encoder_lstm_forward.2} parent=67 // pred_fallthru
        _
      // Predicated region
      $region77: #{encoder_lstm_forward.2} parent=67 // pred_check
        %p1662 = pneg %p286
      $region78: #{encoder_lstm_forward.2} parent=67 // pred_check_branch
        %1664 = sbr.rel (%p1662) target = $region80
      $region79: #{encoder_lstm_forward.2} parent=67 // pred_region
        %p1665 = scmp.lt.s32.totalorder %s26, 1
        %s1666 = scalar_select %p1665, %s26, 1
        %s1667 = smul.addr %s1666, 2
        %s1668 = scalar_lea.vmem %s8, %s1667
      $region80: #{encoder_lstm_forward.2} parent=67 // pred_fallthru
        _
    $region68: #{encoder_lstm_forward.2} parent=5 // pred_fallthru
      _
  $region6: #{encoder_lstm_forward.2} parent=0 // loop_footer
    %s19 = sadd.s32 1, %s15
  $region7: #{encoder_lstm_forward.2} parent=0 // loop_footer_branch
    %14 = sbr.rel target = $region3
  $region8: #{encoder_lstm_forward.2} parent=0 // loop_exit
    _

</llo_original>
